<compile_context>
chip_gen: v7x
topology: tpu7x:2x2x1
jax: 0.10.0
libtpu: 0.0.40
codegen_flags: <defaults>
</compile_context>

<pallas_src>
import numpy as np
import jax
import jax.numpy as jnp
from jax import lax
from jax.experimental import pallas as pl
from jax.experimental.pallas import tpu as pltpu


# Problems with M*K*N below this go straight to XLA (single-tile matmuls pay
# more in pad/launch/slice overhead than the matmul itself).
_SMALL_PROBLEM = 1 << 18

_TM_MAX = 512
_TN_MAX = 512
_TK_MAX = 2048


def _cdiv(a, b):
    return -(-a // b)


def _round_up(x, m):
    return _cdiv(x, m) * m


def _pick_tile(dim, max_tile, align):
    """Largest aligned tile <= max_tile that keeps padding waste small."""
    if dim <= max_tile:
        return _round_up(dim, align)
    n_tiles = _cdiv(dim, max_tile)
    return _round_up(_cdiv(dim, n_tiles), align)


def _vmem_budget_bytes():
    cap = 128 * 2**20
    try:
        info = pltpu.get_tpu_info()
        c = getattr(info, "vmem_capacity_bytes", None)
        if c:
            cap = int(c)
    except Exception:
        pass
    # ~3/4 of physical VMEM: ~96 MiB on v5e/v6e, ~48 MiB on v7x.
    return min(int(cap * 3 // 4), 100 * 2**20)


def _footprint_bytes(tm, tn, tk, in_bytes, out_bytes, use_scratch, has_bias):
    f = 2 * (tm * tk + tk * tn) * in_bytes      # double-buffered x / w streams
    f += 2 * tm * tn * out_bytes                # double-buffered output tile
    if use_scratch:
        f += tm * tn * 4                        # f32 accumulator scratch
    if has_bias:
        f += 2 * tn * 4                         # f32 bias row
    return f


def _make_kernel(has_bias, w_is_nk, acc_in_out):
    """Build a Dense kernel variant.

    has_bias   : add an f32 bias row in the finalize step.
    w_is_nk    : weight tile is (tn, tk) (reverse_order native layout) and is
                 contracted on its last dim via lax.dot_general.
    acc_in_out : output dtype is f32 -> accumulate directly into o_ref.
    """

    def mm(x, w):
        if w_is_nk:
            return lax.dot_general(
                x, w, dimension_numbers=(((1,), (1,)), ((), ())),
                preferred_element_type=jnp.float32)
        return jnp.dot(x, w, preferred_element_type=jnp.float32)

    if acc_in_out:
        if has_bias:
            def kernel(x_ref, w_ref, b_ref, o_ref):
                k = pl.program_id(2)

                @pl.when(k == 0)
                def _():
                    o_ref[...] = jnp.zeros_like(o_ref)

                o_ref[...] += mm(x_ref[...], w_ref[...])

                @pl.when(k == pl.num_programs(2) - 1)
                def _():
                    o_ref[...] += b_ref[...]
        else:
            def kernel(x_ref, w_ref, o_ref):
                k = pl.program_id(2)

                @pl.when(k == 0)
                def _():
                    o_ref[...] = jnp.zeros_like(o_ref)

                o_ref[...] += mm(x_ref[...], w_ref[...])
    else:
        if has_bias:
            def kernel(x_ref, w_ref, b_ref, o_ref, acc_ref):
                k = pl.program_id(2)

                @pl.when(k == 0)
                def _():
                    acc_ref[...] = jnp.zeros_like(acc_ref)

                acc_ref[...] += mm(x_ref[...], w_ref[...])

                @pl.when(k == pl.num_programs(2) - 1)
                def _():
                    o_ref[...] = (acc_ref[...] + b_ref[...]).astype(o_ref.dtype)
        else:
            def kernel(x_ref, w_ref, o_ref, acc_ref):
                k = pl.program_id(2)

                @pl.when(k == 0)
                def _():
                    acc_ref[...] = jnp.zeros_like(acc_ref)

                acc_ref[...] += mm(x_ref[...], w_ref[...])

                @pl.when(k == pl.num_programs(2) - 1)
                def _():
                    o_ref[...] = acc_ref[...].astype(o_ref.dtype)

    return kernel


def dense_pallas(x, weight, bias, inp_shape, out_shape, reverse_order=False):
    """Equivalent of Dense.forward (einsum dense + optional bias)."""
    inp_shape = tuple(inp_shape)
    out_shape = tuple(out_shape)
    n_inp = len(inp_shape)
    n_out = len(out_shape)

    batch_shape = x.shape[: x.ndim - n_inp]
    M = int(np.prod(batch_shape)) if batch_shape else 1
    K = int(np.prod(inp_shape))
    N = int(np.prod(out_shape))

    # No silent downcast: follow einsum's dtype promotion.
    compute_dtype = jnp.result_type(x.dtype, weight.dtype)
    out_dtype = compute_dtype

    # ---- small-problem fast path: plain XLA beats pad + launch overhead ----
    if M * K * N < _SMALL_PROBLEM:
        axes_x = tuple(range(x.ndim - n_inp, x.ndim))
        axes_w = (tuple(range(n_out, n_out + n_inp)) if reverse_order
                  else tuple(range(n_inp)))
        out = jnp.tensordot(x.astype(compute_dtype), weight.astype(compute_dtype),
                            axes=(axes_x, axes_w))
        if bias is not None:
            out = out + bias.astype(out.dtype)
        return out

    # ---- Pallas path ----
    x2 = x.reshape(M, K).astype(compute_dtype)
    if reverse_order:
        # Keep the weight in its native (N, K) layout -- no host-side transpose;
        # the MXU contracts the last dims in-layout inside the kernel.
        w2 = weight.reshape(N, K).astype(compute_dtype)
    else:
        w2 = weight.reshape(K, N).astype(compute_dtype)
    # TODO(synk): for inference, pre-pad/cache the reshaped weight at parameter
    # setup so padding (when needed) is not re-materialized on every call.

    in_bytes = jnp.dtype(compute_dtype).itemsize
    out_bytes = jnp.dtype(out_dtype).itemsize
    sub = {4: 8, 2: 16, 1: 32}.get(in_bytes, 8)

    has_bias = bias is not None
    use_scratch = jnp.dtype(out_dtype) != jnp.dtype(jnp.float32)

    budget = _vmem_budget_bytes()

    tm = _pick_tile(M, _TM_MAX, sub)
    tn = _pick_tile(N, _TN_MAX, 128)
    tk = _pick_tile(K, _TK_MAX, 128)

    # Safety: shrink tiles if the double-buffered footprint exceeds the budget.
    while _footprint_bytes(tm, tn, tk, in_bytes, out_bytes,
                           use_scratch, has_bias) > int(0.85 * budget):
        if tk > 128:
            tk = max(128, _round_up(tk // 2, 128))
        elif tn > 128:
            tn = max(128, _round_up(tn // 2, 128))
        elif tm > sub:
            tm = max(sub, _round_up(tm // 2, sub))
        else:
            break

    Mp = _round_up(M, tm)
    Np = _round_up(N, tn)
    Kp = _round_up(K, tk)

    # Guarantee >= 2 parallel tiles when possible so v7x megacore engages.
    if Mp // tm == 1 and Np // tn == 1:
        if tn % 256 == 0:
            tn //= 2
        elif tm % (2 * sub) == 0:
            tm //= 2

    grid = (Mp // tm, Np // tn, Kp // tk)

    if (Mp, Kp) != (M, K):
        x2 = jnp.pad(x2, ((0, Mp - M), (0, Kp - K)))

    in_specs = [pl.BlockSpec((tm, tk), lambda i, j, k: (i, k))]
    if reverse_order:
        if (Np, Kp) != (N, K):
            w2 = jnp.pad(w2, ((0, Np - N), (0, Kp - K)))
        in_specs.append(pl.BlockSpec((tn, tk), lambda i, j, k: (j, k)))
    else:
        if (Kp, Np) != (K, N):
            w2 = jnp.pad(w2, ((0, Kp - K), (0, Np - N)))
        in_specs.append(pl.BlockSpec((tk, tn), lambda i, j, k: (k, j)))

    args = [x2, w2]
    if has_bias:
        # Bias stays float32 end-to-end (added to the f32 accumulator).
        b2 = bias.reshape(1, N).astype(jnp.float32)
        if Np != N:
            b2 = jnp.pad(b2, ((0, 0), (0, Np - N)))
        args.append(b2)
        in_specs.append(pl.BlockSpec((1, tn), lambda i, j, k: (0, j)))

    kernel = _make_kernel(has_bias, reverse_order, not use_scratch)
    scratch_shapes = [pltpu.VMEM((tm, tn), jnp.float32)] if use_scratch else []

    # Real traffic: x is streamed once per N-tile, W once per M-tile.
    cost = pl.CostEstimate(
        flops=2 * Mp * Np * Kp,
        bytes_accessed=(Mp * Kp * (Np // tn) + Kp * Np * (Mp // tm)) * in_bytes
                       + Mp * Np * out_bytes,
        transcendentals=0,
    )

    out2 = pl.pallas_call(
        kernel,
        out_shape=jax.ShapeDtypeStruct((Mp, Np), out_dtype),
        grid=grid,
        in_specs=in_specs,
        out_specs=pl.BlockSpec((tm, tn), lambda i, j, k: (i, j)),
        scratch_shapes=scratch_shapes,
        compiler_params=pltpu.CompilerParams(
            dimension_semantics=("parallel", "parallel", "arbitrary"),
            vmem_limit_bytes=budget,
        ),
        cost_estimate=cost,
    )(*args)

    out2 = out2[:M, :N]
    return out2.reshape(batch_shape + out_shape)


if __name__ == "__main__":
    key = jax.random.PRNGKey(0)
    k1, k2, k3, k4, k5, k6 = jax.random.split(key, 6)

    def make_params(k, inp_shape, out_shape, reverse_order, with_bias):
        fan_in = int(np.prod(inp_shape))
        fan_out = int(np.prod(out_shape))
        std = np.sqrt(1.0 / float(fan_in + fan_out))
        wshape = (tuple(out_shape) + tuple(inp_shape)) if reverse_order \
            else (tuple(inp_shape) + tuple(out_shape))
        w = (std * jax.random.normal(k, wshape)).astype(jnp.float32)
        b = jnp.zeros(out_shape, jnp.float32) if with_bias else None
        return w, b

    # --- Test A: module config Dense((4,16),(8,4), bias=True), small -> fast path
    inp_shape, out_shape, batch = (4, 16), (8, 4), (2, 8)
    w, b = make_params(k1, inp_shape, out_shape, False, True)
    x = jax.random.normal(k2, batch + inp_shape, jnp.float32)
    out = jax.block_until_ready(dense_pallas(x, w, b, inp_shape, out_shape))
    ref = jnp.einsum("...ab,abef->...ef", x, w) + b
    np.testing.assert_allclose(np.asarray(out), np.asarray(ref), rtol=1e-5, atol=1e-5)
    assert out.shape == batch + out_shape

    # --- Test B: Pallas path, forward order, bias (exercises padding + megacore split)
    inp_shape, out_shape, batch = (8, 40), (16, 16), (2, 150)
    w, b = make_params(k3, inp_shape, out_shape, False, True)
    x = jax.random.normal(k4, batch + inp_shape, jnp.float32)
    out = jax.block_until_ready(dense_pallas(x, w, b, inp_shape, out_shape))
    ref = jnp.einsum("...ab,abef->...ef", x, w, precision="highest") + b
    np.testing.assert_allclose(np.asarray(out), np.asarray(ref), rtol=1e-2, atol=1e-3)
    assert out.shape == batch + out_shape

    # --- Test C: Pallas path, reverse_order, no bias (weight kept in native (N,K) layout)
    inp_shape, out_shape, batch = (4, 64), (8, 32), (16, 20)
    w, _ = make_params(k5, inp_shape, out_shape, True, False)
    x = jax.random.normal(k6, batch + inp_shape, jnp.float32)
    out = jax.block_until_ready(
        dense_pallas(x, w, None, inp_shape, out_shape, reverse_order=True))
    ref = jnp.einsum("...ab,efab->...ef", x, w, precision="highest")
    np.testing.assert_allclose(np.asarray(out), np.asarray(ref), rtol=1e-2, atol=1e-3)
    assert out.shape == batch + out_shape

    print("KERNEL_OK")
</pallas_src>

<mosaic_0001>
module attributes {stable_mosaic.version = 11 : i64} {
  func.func @kernel(%arg0: i32, %arg1: i32, %arg2: i32, %arg3: memref<304x384xf32, #tpu.memory_space<vmem>>, %arg4: memref<384x128xf32, #tpu.memory_space<vmem>>, %arg5: memref<1x128xf32, #tpu.memory_space<vmem>>, %arg6: memref<304x128xf32, #tpu.memory_space<vmem>>) attributes {dimension_semantics = [#tpu.dimension_semantics<parallel>, #tpu.dimension_semantics<parallel>, #tpu.dimension_semantics<arbitrary>], iteration_bounds = array<i64: 1, 2, 1>, scalar_prefetch = 0 : i64, scratch_operands = 0 : i64, tpu.core_type = #tpu.core_type<tc>, window_params = [{transform_indices = @transform_0, window_bounds = array<i64: 304, 384>}, {transform_indices = @transform_1, window_bounds = array<i64: 384, 128>}, {transform_indices = @transform_2, window_bounds = array<i64: 1, 128>}, {transform_indices = @transform_3, window_bounds = array<i64: 304, 128>}]} {
    %c0_i32 = arith.constant 0 : i32
    %0 = arith.cmpi eq, %arg2, %c0_i32 : i32
    %1 = arith.extui %0 : i1 to i32
    %c0_i32_0 = arith.constant 0 : i32
    %2 = arith.cmpi ne, %1, %c0_i32_0 : i32
    scf.if %2 {
      %cst_10 = arith.constant 0.000000e+00 : f32
      %12 = vector.broadcast %cst_10 : f32 to vector<304x128xf32>
      %c0_11 = arith.constant 0 : index
      %c0_12 = arith.constant 0 : index
      %13 = vector.load %arg6[%c0_11, %c0_12] : memref<304x128xf32, #tpu.memory_space<vmem>>, vector<304x128xf32>
      tpu.vector_store %arg6[%c0_11, %c0_12], %12 {strides = array<i32>} : memref<304x128xf32, #tpu.memory_space<vmem>>, vector<304x128xf32>,
    } else {
    }
    %c0 = arith.constant 0 : index
    %c0_1 = arith.constant 0 : index
    %3 = vector.load %arg6[%c0, %c0_1] : memref<304x128xf32, #tpu.memory_space<vmem>>, vector<304x128xf32>
    %c0_2 = arith.constant 0 : index
    %c0_3 = arith.constant 0 : index
    %4 = vector.load %arg3[%c0_2, %c0_3] : memref<304x384xf32, #tpu.memory_space<vmem>>, vector<304x384xf32>
    %c0_4 = arith.constant 0 : index
    %c0_5 = arith.constant 0 : index
    %5 = vector.load %arg4[%c0_4, %c0_5] : memref<384x128xf32, #tpu.memory_space<vmem>>, vector<384x128xf32>
    %cst = arith.constant dense<0.000000e+00> : vector<304x128xf32>
    %6 = tpu.matmul %4, %5, %cst {dimension_numbers = #tpu.dot_dimension_numbers<[1], [0], [0], [1], [0, 0, 1, 1], [], []>} : vector<304x384xf32>, vector<384x128xf32>, vector<304x128xf32> -> vector<304x128xf32>
    %7 = arith.addf %3, %6 : vector<304x128xf32>
    %c0_6 = arith.constant 0 : index
    %c0_7 = arith.constant 0 : index
    %8 = vector.load %arg6[%c0_6, %c0_7] : memref<304x128xf32, #tpu.memory_space<vmem>>, vector<304x128xf32>
    tpu.vector_store %arg6[%c0_6, %c0_7], %7 {strides = array<i32>} : memref<304x128xf32, #tpu.memory_space<vmem>>, vector<304x128xf32>,
    %c0_i32_8 = arith.constant 0 : i32
    %9 = arith.cmpi eq, %arg2, %c0_i32_8 : i32
    %10 = arith.extui %9 : i1 to i32
    %c0_i32_9 = arith.constant 0 : i32
    %11 = arith.cmpi ne, %10, %c0_i32_9 : i32
    scf.if %11 {
      %c0_10 = arith.constant 0 : index
      %c0_11 = arith.constant 0 : index
      %12 = vector.load %arg6[%c0_10, %c0_11] : memref<304x128xf32, #tpu.memory_space<vmem>>, vector<304x128xf32>
      %c0_12 = arith.constant 0 : index
      %c0_13 = arith.constant 0 : index
      %13 = vector.load %arg5[%c0_12, %c0_13] : memref<1x128xf32, #tpu.memory_space<vmem>>, vector<1x128xf32>
      %14 = vector.broadcast %13 : vector<1x128xf32> to vector<304x128xf32>
      %15 = arith.addf %12, %14 : vector<304x128xf32>
      %c0_14 = arith.constant 0 : index
      %c0_15 = arith.constant 0 : index
      %16 = vector.load %arg6[%c0_14, %c0_15] : memref<304x128xf32, #tpu.memory_space<vmem>>, vector<304x128xf32>
      tpu.vector_store %arg6[%c0_14, %c0_15], %15 {strides = array<i32>} : memref<304x128xf32, #tpu.memory_space<vmem>>, vector<304x128xf32>,
    } else {
    }
    return
  }
  func.func @transform_0(%arg0: i32, %arg1: i32, %arg2: i32) -> (i32, i32) {
    %c0_i32 = arith.constant 0 : i32
    return %arg0, %arg2 : i32, i32
  }
  func.func @transform_1(%arg0: i32, %arg1: i32, %arg2: i32) -> (i32, i32) {
    %c0_i32 = arith.constant 0 : i32
    return %arg2, %arg1 : i32, i32
  }
  func.func @transform_2(%arg0: i32, %arg1: i32, %arg2: i32) -> (i32, i32) {
    %c0_i32 = arith.constant 0 : i32
    %c0_i32_0 = arith.constant 0 : i32
    return %c0_i32, %arg1 : i32, i32
  }
  func.func @transform_3(%arg0: i32, %arg1: i32, %arg2: i32) -> (i32, i32) {
    %c0_i32 = arith.constant 0 : i32
    return %arg0, %arg1 : i32, i32
  }
}

</mosaic_0001>

<llo_original>
// kernel: tpu_custom_call.1
$region0: #{tpu_custom_call.1}
  #allocation0 [shape = 'u32[]', space=smem, size = 0x4, offset = 0x4, fixed_abs, tag = 'smem constant byte address 0x4 - core index']
  #allocation1 [shape = 'u32[144,128]{1,0:T(1,128)}', space=vmem, size = 0x12000, scoped, tag = 'internal scratch']
  %s0 = inlined_call_operand.hbm [shape: f32[304,384], index: 0, kind: input, shape index: {}]
  %s1 = inlined_call_operand.hbm [shape: f32[384,256], index: 1, kind: input, shape index: {}]
  %s2 = inlined_call_operand.hbm [shape: f32[1,256], index: 2, kind: input, shape index: {}]
  %s3 = inlined_call_operand.hbm [shape: f32[304,256], index: 3, kind: output, shape index: {}]
  %s4 = sld [smem:[#allocation0]]
  $region65: #{tpu_custom_call.1} parent=0
    _
  %s6 = ssub.s32 1, %s4
  %s7 = scalar_select 0, %s6, %s4
  $region1: #{tpu_custom_call.1} parent=0
    #allocation2 [shape = 'u8[466944]{0}', space=vmem, size = 0x72000, scoped, tag = 'input window, operand 0, single buffered']
    #allocation3 [shape = 's32[2]{0}', space=sflag, size = 0x8, scoped, tag = 'scoped memory for tpu_custom_call.1']
    #allocation4 [shape = 's32[2]{0}', space=sflag, size = 0x8, scoped, tag = 'scoped memory for tpu_custom_call.1']
    #allocation5 [shape = 'u8[393216]{0}', space=vmem, size = 0x60000, scoped, tag = 'input window, operand 1']
    #allocation6 [shape = 's32[2]{0}', space=sflag, size = 0x8, scoped, tag = 'scoped memory for tpu_custom_call.1']
    #allocation7 [shape = 'u8[1024]{0}', space=vmem, size = 0x400, scoped, tag = 'input window, operand 2']
    #allocation8 [shape = 'u8[311296]{0}', space=vmem, size = 0x4c000, scoped, tag = 'output window, operand 0']
    %8 = vsyncpa [#allocation3], 0
    %9 = vsyncpa [#allocation6], 0
    %s10 = scalar_lea.sflag [#allocation6], 1
    %11 = vsyncpa %s10, 0
    %12 = vsyncpa [#allocation4], 0
    %s13 = scalar_lea.sflag [#allocation4], 1
    %14 = vsyncpa %s13, 0
    loop: start=0, step=1, limit=4
    $region2: #{tpu_custom_call.1} parent=1 // loop_pre_header
      _
    $region3: #{tpu_custom_call.1} parent=1 // loop_header
      %s16 = sphi 0, %s20
      %p17 = scmp.ge.s32.totalorder %s16, 4
      %s23 = sphi 0, %s42
      %s24 = sphi 0, %s38
      %s25 = sphi 0, %s34
      %s26 = sphi 0, %s23
      %s27 = sphi 0, %s24
      %s28 = sphi 0, %s25
      %s29 = sphi 0, %s26
      %s30 = sphi 0, %s27
      %s31 = sphi 0, %s28
      %s47 = sphi 0, %s49
      %s50 = sphi 0, %s47
      %s51 = sphi 0, %s50
      %s67 = sphi 0, %s51
      %s75 = sphi 0, %s77
      %s78 = sphi 0, %s75
      %s79 = sphi 0, %s78
      %s95 = sphi 0, %s79
      %s101 = sphi 0, %s103
      %s104 = sphi 0, %s101
      %s105 = sphi 0, %s104
      %s121 = sphi 0, %s105
      %s129 = sphi 0, %s131
      %s132 = sphi 0, %s129
      %s133 = sphi 0, %s132
      %s149 = sphi 0, %s133
    $region4: #{tpu_custom_call.1} parent=1 // loop_header_branch
      %19 = sbr.rel (%p17) target = $region8
    $region5: #{tpu_custom_call.1} parent=1 // loop_body
      %s21 = ssub.s32 %s16, 1
      %s22 = ssub.s32 %s16, 2
      %s32 = sadd.s32 1, %s25
      %p33 = scmp.ge.s32.totalorder %s32, 1
      %s34 = scalar_select %p33, 0, %s32
      %s35 = sadd.s32 1, %s24
      %s36 = scalar_select %p33, %s35, %s24
      %p37 = scmp.ge.s32.totalorder %s36, 2
      %s38 = scalar_select %p37, 0, %s36
      %s39 = sadd.s32 1, %s23
      %s40 = scalar_select %p37, %s39, %s23
      %p41 = scmp.ge.s32.totalorder %s40, 1
      %s42 = scalar_select %p41, 0, %s40
      %s43 = ssub.s32 %s23, %s42
      %s44 = ssub.s32 %s25, %s34
      %s45 = sor.u32 %s43, %s44
      %p46 = scmp.eq.s32.totalorder %s45, 0
      %s48 = sadd.s32 %s47, 1
      %s49 = scalar_select %p46, %s47, %s48
      %p52 = pneg %p46
      %p53 = scmp.eq.s32.totalorder %s16, 1
      %p54 = por %p52, %p53
      %p55 = scmp.ne.s32.totalorder %s47, %s50
      %p56 = scmp.eq.s32.totalorder %s16, 0
      %p57 = por %p55, %p56
      %p58 = scmp.ne.s32.totalorder %s47, %s50
      %p59 = scmp.eq.s32.totalorder %s21, 1
      %p60 = por %p58, %p59
      %p61 = scmp.ne.s32.totalorder %s50, %s51
      %p62 = scmp.eq.s32.totalorder %s21, 0
      %p63 = por %p61, %p62
      %p64 = scmp.ne.s32.totalorder %s50, %s51
      %p65 = scmp.eq.s32.totalorder %s22, 1
      %p66 = por %p64, %p65
      %p68 = scmp.ne.s32.totalorder %s51, %s67
      %p69 = scmp.eq.s32.totalorder %s22, 0
      %p70 = por %p68, %p69
      %s71 = ssub.s32 %s25, %s34
      %s72 = ssub.s32 %s24, %s38
      %s73 = sor.u32 %s71, %s72
      %p74 = scmp.eq.s32.totalorder %s73, 0
      %s76 = sadd.s32 %s75, 1
      %s77 = scalar_select %p74, %s75, %s76
      %p80 = pneg %p74
      %p81 = scmp.eq.s32.totalorder %s16, 1
      %p82 = por %p80, %p81
      %p83 = scmp.ne.s32.totalorder %s75, %s78
      %p84 = scmp.eq.s32.totalorder %s16, 0
      %p85 = por %p83, %p84
      %p86 = scmp.ne.s32.totalorder %s75, %s78
      %p87 = scmp.eq.s32.totalorder %s21, 1
      %p88 = por %p86, %p87
      %p89 = scmp.ne.s32.totalorder %s78, %s79
      %p90 = scmp.eq.s32.totalorder %s21, 0
      %p91 = por %p89, %p90
      %p92 = scmp.ne.s32.totalorder %s78, %s79
      %p93 = scmp.eq.s32.totalorder %s22, 1
      %p94 = por %p92, %p93
      %p96 = scmp.ne.s32.totalorder %s79, %s95
      %p97 = scmp.eq.s32.totalorder %s22, 0
      %p98 = por %p96, %p97
      %s99 = ssub.s32 %s24, %s38
      %p100 = scmp.eq.s32.totalorder %s99, 0
      %s102 = sadd.s32 %s101, 1
      %s103 = scalar_select %p100, %s101, %s102
      %p106 = pneg %p100
      %p107 = scmp.eq.s32.totalorder %s16, 1
      %p108 = por %p106, %p107
      %p109 = scmp.ne.s32.totalorder %s101, %s104
      %p110 = scmp.eq.s32.totalorder %s16, 0
      %p111 = por %p109, %p110
      %p112 = scmp.ne.s32.totalorder %s101, %s104
      %p113 = scmp.eq.s32.totalorder %s21, 1
      %p114 = por %p112, %p113
      %p115 = scmp.ne.s32.totalorder %s104, %s105
      %p116 = scmp.eq.s32.totalorder %s21, 0
      %p117 = por %p115, %p116
      %p118 = scmp.ne.s32.totalorder %s104, %s105
      %p119 = scmp.eq.s32.totalorder %s22, 1
      %p120 = por %p118, %p119
      %p122 = scmp.ne.s32.totalorder %s105, %s121
      %p123 = scmp.eq.s32.totalorder %s22, 0
      %p124 = por %p122, %p123
      %s125 = ssub.s32 %s23, %s42
      %s126 = ssub.s32 %s24, %s38
      %s127 = sor.u32 %s125, %s126
      %p128 = scmp.eq.s32.totalorder %s127, 0
      %s130 = sadd.s32 %s129, 1
      %s131 = scalar_select %p128, %s129, %s130
      %p134 = pneg %p128
      %p135 = scmp.eq.s32.totalorder %s16, 1
      %p136 = por %p134, %p135
      %p137 = scmp.ne.s32.totalorder %s129, %s132
      %p138 = scmp.eq.s32.totalorder %s16, 0
      %p139 = por %p137, %p138
      %p140 = scmp.ne.s32.totalorder %s129, %s132
      %p141 = scmp.eq.s32.totalorder %s21, 1
      %p142 = por %p140, %p141
      %p143 = scmp.ne.s32.totalorder %s132, %s133
      %p144 = scmp.eq.s32.totalorder %s21, 0
      %p145 = por %p143, %p144
      %p146 = scmp.ne.s32.totalorder %s132, %s133
      %p147 = scmp.eq.s32.totalorder %s22, 1
      %p148 = por %p146, %p147
      %p150 = scmp.ne.s32.totalorder %s133, %s149
      %p151 = scmp.eq.s32.totalorder %s22, 0
      %p152 = por %p150, %p151
      %p153 = scmp.le.s32.totalorder 1, %s16
      %p154 = scmp.lt.s32.totalorder %s16, 3
      %p155 = pnand %p153, %p154
      %p156 = pneg %p155
      // Predicated region
      $region9: #{tpu_custom_call.1} parent=5 // pred_check
        _
      $region10: #{tpu_custom_call.1} parent=5 // pred_check_branch
        %158 = sbr.rel (%p155) target = $region12
      $region11: #{tpu_custom_call.1} parent=5 // pred_region
        %s159 = ssub.s32 %s16, 1
        // Predicated region
        $region13: #{tpu_custom_call.1} parent=11 // pred_check
          %p160 = pneg %p63
        $region14: #{tpu_custom_call.1} parent=11 // pred_check_branch
          %162 = sbr.rel (%p160) target = $region16
        $region15: #{tpu_custom_call.1} parent=11 // pred_region
          %s163 = smul.u32 38, %s26
          %s164 = smul.u32 3, %s28
          %s166 = ssub.s32 14592, 14592
          %167 = vsyncadd [#allocation3], %s166
          %s168 = smul.addr %s163, 3
          %s169 = sadd.s32 %s164, %s168
          %s170 = smul.addr %s169, 128
          %s171 = scalar_lea.hbm %s0, %s170
          %s172 = sshll.u32 [#allocation2], 4
          %s173 = int_to_ptr.vmem [resolvable:$true] %s172
          %178 = dma.hbm_to_vmem [thread:$0]  %s171, 14592, %s173, [#allocation3], 384, 384, 24
        $region16: #{tpu_custom_call.1} parent=11 // pred_fallthru
          _
      $region12: #{tpu_custom_call.1} parent=5 // pred_fallthru
        _
      %p179 = scmp.lt.s32.totalorder %s16, 2
      // Predicated region
      $region17: #{tpu_custom_call.1} parent=5 // pred_check
        %p180 = pneg %p179
      $region18: #{tpu_custom_call.1} parent=5 // pred_check_branch
        %182 = sbr.rel (%p180) target = $region20
      $region19: #{tpu_custom_call.1} parent=5 // pred_region
        // Predicated region
        $region21: #{tpu_custom_call.1} parent=19 // pred_check
          %p183 = pneg %p85
        $region22: #{tpu_custom_call.1} parent=19 // pred_check_branch
          %185 = sbr.rel (%p183) target = $region24
        $region23: #{tpu_custom_call.1} parent=19 // pred_region
          %s186 = sand.u32 %s16, 1
          %s187 = scalar_lea.sflag [#allocation6], %s186
          %s188 = sand.u32 %s75, 1
          %s189 = smul.addr %s188, 384
          %s190 = scalar_lea.vmem [#allocation5], %s189
          %s191 = smul.u32 48, %s25
          %s193 = ssub.s32 6144, 6144
          %194 = vsyncadd %s187, %s193
          %s195 = smul.addr %s191, 2
          %s196 = sadd.s32 %s24, %s195
          %s197 = smul.addr %s196, 128
          %s198 = scalar_lea.hbm %s1, %s197
          %s199 = sshll.u32 %s190, 4
          %s200 = int_to_ptr.vmem [resolvable:$true] %s199
          %205 = dma.hbm_to_vmem [thread:$0]  %s198, 6144, %s200, %s187, 256, 128, 8
        $region24: #{tpu_custom_call.1} parent=19 // pred_fallthru
          _
        // Predicated region
        $region25: #{tpu_custom_call.1} parent=19 // pred_check
          %p206 = pneg %p111
        $region26: #{tpu_custom_call.1} parent=19 // pred_check_branch
          %208 = sbr.rel (%p206) target = $region28
        $region27: #{tpu_custom_call.1} parent=19 // pred_region
          %s209 = sand.u32 %s16, 1
          %s210 = scalar_lea.sflag [#allocation6], %s209
          %s211 = sand.u32 %s101, 1
          %s212 = scalar_lea.vmem [#allocation7], %s211
          %s214 = ssub.s32 16, 16
          %215 = vsyncadd %s210, %s214
          %s216 = smul.addr %s24, 16
          %s217 = scalar_lea.hbm %s2, %s216
          %s219 = sshll.u32 %s212, 4
          %s220 = int_to_ptr.vmem [resolvable:$true] %s219
          %222 = dma.hbm_to_vmem [thread:$0]  %s217, 16, %s220, %s210
        $region28: #{tpu_custom_call.1} parent=19 // pred_fallthru
          _
      $region20: #{tpu_custom_call.1} parent=5 // pred_fallthru
        _
      %p223 = scmp.le.s32.totalorder 1, %s16
      %p224 = scmp.lt.s32.totalorder %s16, 3
      %p225 = pnand %p223, %p224
      %p226 = pneg %p225
      // Predicated region
      $region29: #{tpu_custom_call.1} parent=5 // pred_check
        _
      $region30: #{tpu_custom_call.1} parent=5 // pred_check_branch
        %228 = sbr.rel (%p225) target = $region32
      $region31: #{tpu_custom_call.1} parent=5 // pred_region
        %s229 = ssub.s32 %s16, 1
        // Predicated region
        $region33: #{tpu_custom_call.1} parent=31 // pred_check
          %p230 = pneg %p63
        $region34: #{tpu_custom_call.1} parent=31 // pred_check_branch
          %232 = sbr.rel (%p230) target = $region36
        $region35: #{tpu_custom_call.1} parent=31 // pred_region
          %233 = dma.done [#allocation3], 14592
        $region36: #{tpu_custom_call.1} parent=31 // pred_fallthru
          _
        %s234 = sand.u32 %s21, 1
        %s235 = scalar_lea.sflag [#allocation6], %s234
        %s236 = sand.u32 %s78, 1
        %s237 = smul.addr %s236, 384
        %s238 = scalar_lea.vmem [#allocation5], %s237
        // Predicated region
        $region37: #{tpu_custom_call.1} parent=31 // pred_check
          %p239 = pneg %p91
        $region38: #{tpu_custom_call.1} parent=31 // pred_check_branch
          %241 = sbr.rel (%p239) target = $region40
        $region39: #{tpu_custom_call.1} parent=31 // pred_region
          %242 = dma.done %s235, 6144
        $region40: #{tpu_custom_call.1} parent=31 // pred_fallthru
          _
        %s243 = sand.u32 %s21, 1
        %s244 = scalar_lea.sflag [#allocation6], %s243
        %s245 = sand.u32 %s104, 1
        %s246 = scalar_lea.vmem [#allocation7], %s245
        // Predicated region
        $region41: #{tpu_custom_call.1} parent=31 // pred_check
          %p247 = pneg %p117
        $region42: #{tpu_custom_call.1} parent=31 // pred_check_branch
          %249 = sbr.rel (%p247) target = $region44
        $region43: #{tpu_custom_call.1} parent=31 // pred_region
          %250 = dma.done %s244, 16
        $region44: #{tpu_custom_call.1} parent=31 // pred_fallthru
          _
        %p251 = pneg %p63
        %p252 = pneg %p60
        %s253 = sand.u32 %s21, 1
        %s254 = scalar_lea.sflag [#allocation6], %s253
        %s255 = sand.u32 %s78, 1
        %s256 = smul.addr %s255, 384
        %s257 = scalar_lea.vmem [#allocation5], %s256
        %p258 = pneg %p91
        %p259 = pneg %p88
        %s260 = sand.u32 %s21, 1
        %s261 = scalar_lea.sflag [#allocation6], %s260
        %s262 = sand.u32 %s104, 1
        %s263 = scalar_lea.vmem [#allocation7], %s262
        %p264 = pneg %p117
        %p265 = pneg %p114
        %p266 = pneg %p145
        %p267 = pneg %p142
        %s268 = sand.u32 %s132, 1
        %s269 = scalar_lea.sflag [#allocation4], %s268
        %s270 = sand.u32 %s132, 1
        %s271 = smul.addr %s270, 304
        %s272 = scalar_lea.vmem [#allocation8], %s271
        %s273 = smul.u32 38, %s26
        %s274 = smul.u32 3, %s28
        %s275 = smul.u32 48, %s28
        %s276 = smul.u32 38, %s26
        %p277 = scmp.eq.s32.totalorder %s28, 0
        // Predicated region
        $region45: #{tpu_custom_call.1} parent=31 // pred_check
          %p278 = pneg %p277
        $region46: #{tpu_custom_call.1} parent=31 // pred_check_branch
          %280 = sbr.rel (%p278) target = $region48
        $region47: #{tpu_custom_call.1} parent=31 // pred_region
          %281 = vst [vmem:[%s272] sm:$0xff] 0.0
          %282 = vst [vmem:[%s272 + $0x8] sm:$0xff] 0.0
          %283 = vst [vmem:[%s272 + $0x10] sm:$0xff] 0.0
          %284 = vst [vmem:[%s272 + $0x18] sm:$0xff] 0.0
          %285 = vst [vmem:[%s272 + $0x20] sm:$0xff] 0.0
          %286 = vst [vmem:[%s272 + $0x28] sm:$0xff] 0.0
          %287 = vst [vmem:[%s272 + $0x30] sm:$0xff] 0.0
          %288 = vst [vmem:[%s272 + $0x38] sm:$0xff] 0.0
          %289 = vst [vmem:[%s272 + $0x40] sm:$0xff] 0.0
          %290 = vst [vmem:[%s272 + $0x48] sm:$0xff] 0.0
          %291 = vst [vmem:[%s272 + $0x50] sm:$0xff] 0.0
          %292 = vst [vmem:[%s272 + $0x58] sm:$0xff] 0.0
          %293 = vst [vmem:[%s272 + $0x60] sm:$0xff] 0.0
          %294 = vst [vmem:[%s272 + $0x68] sm:$0xff] 0.0
          %295 = vst [vmem:[%s272 + $0x70] sm:$0xff] 0.0
          %296 = vst [vmem:[%s272 + $0x78] sm:$0xff] 0.0
          %297 = vst [vmem:[%s272 + $0x80] sm:$0xff] 0.0
          %298 = vst [vmem:[%s272 + $0x88] sm:$0xff] 0.0
          %299 = vst [vmem:[%s272 + $0x90] sm:$0xff] 0.0
          %300 = vst [vmem:[%s272 + $0x98] sm:$0xff] 0.0
          %301 = vst [vmem:[%s272 + $0xa0] sm:$0xff] 0.0
          %302 = vst [vmem:[%s272 + $0xa8] sm:$0xff] 0.0
          %303 = vst [vmem:[%s272 + $0xb0] sm:$0xff] 0.0
          %304 = vst [vmem:[%s272 + $0xb8] sm:$0xff] 0.0
          %305 = vst [vmem:[%s272 + $0xc0] sm:$0xff] 0.0
          %306 = vst [vmem:[%s272 + $0xc8] sm:$0xff] 0.0
          %307 = vst [vmem:[%s272 + $0xd0] sm:$0xff] 0.0
          %308 = vst [vmem:[%s272 + $0xd8] sm:$0xff] 0.0
          %309 = vst [vmem:[%s272 + $0xe0] sm:$0xff] 0.0
          %310 = vst [vmem:[%s272 + $0xe8] sm:$0xff] 0.0
          %311 = vst [vmem:[%s272 + $0xf0] sm:$0xff] 0.0
          %312 = vst [vmem:[%s272 + $0xf8] sm:$0xff] 0.0
          %313 = vst [vmem:[%s272 + $0x100] sm:$0xff] 0.0
          %314 = vst [vmem:[%s272 + $0x108] sm:$0xff] 0.0
          %315 = vst [vmem:[%s272 + $0x110] sm:$0xff] 0.0
          %316 = vst [vmem:[%s272 + $0x118] sm:$0xff] 0.0
          %317 = vst [vmem:[%s272 + $0x120] sm:$0xff] 0.0
          %318 = vst [vmem:[%s272 + $0x128] sm:$0xff] 0.0
        $region48: #{tpu_custom_call.1} parent=31 // pred_fallthru
          _
        %v319 = vld [vmem:[%s272] sm:$0xff]
        %v320 = vld [vmem:[%s272 + $0x8] sm:$0xff]
        %v321 = vld [vmem:[%s272 + $0x10] sm:$0xff]
        %v322 = vld [vmem:[%s272 + $0x18] sm:$0xff]
        %v323 = vld [vmem:[%s272 + $0x20] sm:$0xff]
        %v324 = vld [vmem:[%s272 + $0x28] sm:$0xff]
        %v325 = vld [vmem:[%s272 + $0x30] sm:$0xff]
        %v326 = vld [vmem:[%s272 + $0x38] sm:$0xff]
        %v327 = vld [vmem:[%s272 + $0x40] sm:$0xff]
        %v328 = vld [vmem:[%s272 + $0x48] sm:$0xff]
        %v329 = vld [vmem:[%s272 + $0x50] sm:$0xff]
        %v330 = vld [vmem:[%s272 + $0x58] sm:$0xff]
        %v331 = vld [vmem:[%s272 + $0x60] sm:$0xff]
        %v332 = vld [vmem:[%s272 + $0x68] sm:$0xff]
        %v333 = vld [vmem:[%s272 + $0x70] sm:$0xff]
        %v334 = vld [vmem:[%s272 + $0x78] sm:$0xff]
        %v335 = vld [vmem:[%s272 + $0x80] sm:$0xff]
        %v336 = vld [vmem:[%s272 + $0x88] sm:$0xff]
        %v337 = vld [vmem:[%s272 + $0x90] sm:$0xff]
        %v338 = vld [vmem:[%s272 + $0x98] sm:$0xff]
        %v339 = vld [vmem:[%s272 + $0xa0] sm:$0xff]
        %v340 = vld [vmem:[%s272 + $0xa8] sm:$0xff]
        %v341 = vld [vmem:[%s272 + $0xb0] sm:$0xff]
        %v342 = vld [vmem:[%s272 + $0xb8] sm:$0xff]
        %v343 = vld [vmem:[%s272 + $0xc0] sm:$0xff]
        %v344 = vld [vmem:[%s272 + $0xc8] sm:$0xff]
        %v345 = vld [vmem:[%s272 + $0xd0] sm:$0xff]
        %v346 = vld [vmem:[%s272 + $0xd8] sm:$0xff]
        %v347 = vld [vmem:[%s272 + $0xe0] sm:$0xff]
        %v348 = vld [vmem:[%s272 + $0xe8] sm:$0xff]
        %v349 = vld [vmem:[%s272 + $0xf0] sm:$0xff]
        %v350 = vld [vmem:[%s272 + $0xf8] sm:$0xff]
        %v351 = vld [vmem:[%s272 + $0x100] sm:$0xff]
        %v352 = vld [vmem:[%s272 + $0x108] sm:$0xff]
        %v353 = vld [vmem:[%s272 + $0x110] sm:$0xff]
        %v354 = vld [vmem:[%s272 + $0x118] sm:$0xff]
        %v355 = vld [vmem:[%s272 + $0x120] sm:$0xff]
        %v356 = vld [vmem:[%s272 + $0x128] sm:$0xff]
        %v357 = vld [vmem:[#allocation2] sm:$0xff]
        %v358 = vld [vmem:[#allocation2 + $0x8] sm:$0xff]
        %v359 = vld [vmem:[#allocation2 + $0x10] sm:$0xff]
        %v360 = vld [vmem:[#allocation2 + $0x18] sm:$0xff]
        %v361 = vld [vmem:[#allocation2 + $0x20] sm:$0xff]
        %v362 = vld [vmem:[#allocation2 + $0x28] sm:$0xff]
        %v363 = vld [vmem:[#allocation2 + $0x30] sm:$0xff]
        %v364 = vld [vmem:[#allocation2 + $0x38] sm:$0xff]
        %v365 = vld [vmem:[#allocation2 + $0x40] sm:$0xff]
        %v366 = vld [vmem:[#allocation2 + $0x48] sm:$0xff]
        %v367 = vld [vmem:[#allocation2 + $0x50] sm:$0xff]
        %v368 = vld [vmem:[#allocation2 + $0x58] sm:$0xff]
        %v369 = vld [vmem:[#allocation2 + $0x60] sm:$0xff]
        %v370 = vld [vmem:[#allocation2 + $0x68] sm:$0xff]
        %v371 = vld [vmem:[#allocation2 + $0x70] sm:$0xff]
        %v372 = vld [vmem:[#allocation2 + $0x78] sm:$0xff]
        %v373 = vld [vmem:[#allocation2 + $0x80] sm:$0xff]
        %v374 = vld [vmem:[#allocation2 + $0x88] sm:$0xff]
        %v375 = vld [vmem:[#allocation2 + $0x90] sm:$0xff]
        %v376 = vld [vmem:[#allocation2 + $0x98] sm:$0xff]
        %v377 = vld [vmem:[#allocation2 + $0xa0] sm:$0xff]
        %v378 = vld [vmem:[#allocation2 + $0xa8] sm:$0xff]
        %v379 = vld [vmem:[#allocation2 + $0xb0] sm:$0xff]
        %v380 = vld [vmem:[#allocation2 + $0xb8] sm:$0xff]
        %v381 = vld [vmem:[#allocation2 + $0xc0] sm:$0xff]
        %v382 = vld [vmem:[#allocation2 + $0xc8] sm:$0xff]
        %v383 = vld [vmem:[#allocation2 + $0xd0] sm:$0xff]
        %v384 = vld [vmem:[#allocation2 + $0xd8] sm:$0xff]
        %v385 = vld [vmem:[#allocation2 + $0xe0] sm:$0xff]
        %v386 = vld [vmem:[#allocation2 + $0xe8] sm:$0xff]
        %v387 = vld [vmem:[#allocation2 + $0xf0] sm:$0xff]
        %v388 = vld [vmem:[#allocation2 + $0xf8] sm:$0xff]
        %v389 = vld [vmem:[#allocation2 + $0x100] sm:$0xff]
        %v390 = vld [vmem:[#allocation2 + $0x108] sm:$0xff]
        %v391 = vld [vmem:[#allocation2 + $0x110] sm:$0xff]
        %v392 = vld [vmem:[#allocation2 + $0x118] sm:$0xff]
        %v393 = vld [vmem:[#allocation2 + $0x120] sm:$0xff]
        %v394 = vld [vmem:[#allocation2 + $0x128] sm:$0xff]
        %v395 = vld [vmem:[#allocation2 + $0x130] sm:$0xff]
        %v396 = vld [vmem:[#allocation2 + $0x138] sm:$0xff]
        %v397 = vld [vmem:[#allocation2 + $0x140] sm:$0xff]
        %v398 = vld [vmem:[#allocation2 + $0x148] sm:$0xff]
        %v399 = vld [vmem:[#allocation2 + $0x150] sm:$0xff]
        %v400 = vld [vmem:[#allocation2 + $0x158] sm:$0xff]
        %v401 = vld [vmem:[#allocation2 + $0x160] sm:$0xff]
        %v402 = vld [vmem:[#allocation2 + $0x168] sm:$0xff]
        %v403 = vld [vmem:[#allocation2 + $0x170] sm:$0xff]
        %v404 = vld [vmem:[#allocation2 + $0x178] sm:$0xff]
        %v405 = vld [vmem:[#allocation2 + $0x180] sm:$0xff]
        %v406 = vld [vmem:[#allocation2 + $0x188] sm:$0xff]
        %v407 = vld [vmem:[#allocation2 + $0x190] sm:$0xff]
        %v408 = vld [vmem:[#allocation2 + $0x198] sm:$0xff]
        %v409 = vld [vmem:[#allocation2 + $0x1a0] sm:$0xff]
        %v410 = vld [vmem:[#allocation2 + $0x1a8] sm:$0xff]
        %v411 = vld [vmem:[#allocation2 + $0x1b0] sm:$0xff]
        %v412 = vld [vmem:[#allocation2 + $0x1b8] sm:$0xff]
        %v413 = vld [vmem:[#allocation2 + $0x1c0] sm:$0xff]
        %v414 = vld [vmem:[#allocation2 + $0x1c8] sm:$0xff]
        %v415 = vld [vmem:[#allocation2 + $0x1d0] sm:$0xff]
        %v416 = vld [vmem:[#allocation2 + $0x1d8] sm:$0xff]
        %v417 = vld [vmem:[#allocation2 + $0x1e0] sm:$0xff]
        %v418 = vld [vmem:[#allocation2 + $0x1e8] sm:$0xff]
        %v419 = vld [vmem:[#allocation2 + $0x1f0] sm:$0xff]
        %v420 = vld [vmem:[#allocation2 + $0x1f8] sm:$0xff]
        %v421 = vld [vmem:[#allocation2 + $0x200] sm:$0xff]
        %v422 = vld [vmem:[#allocation2 + $0x208] sm:$0xff]
        %v423 = vld [vmem:[#allocation2 + $0x210] sm:$0xff]
        %v424 = vld [vmem:[#allocation2 + $0x218] sm:$0xff]
        %v425 = vld [vmem:[#allocation2 + $0x220] sm:$0xff]
        %v426 = vld [vmem:[#allocation2 + $0x228] sm:$0xff]
        %v427 = vld [vmem:[#allocation2 + $0x230] sm:$0xff]
        %v428 = vld [vmem:[#allocation2 + $0x238] sm:$0xff]
        %v429 = vld [vmem:[#allocation2 + $0x240] sm:$0xff]
        %v430 = vld [vmem:[#allocation2 + $0x248] sm:$0xff]
        %v431 = vld [vmem:[#allocation2 + $0x250] sm:$0xff]
        %v432 = vld [vmem:[#allocation2 + $0x258] sm:$0xff]
        %v433 = vld [vmem:[#allocation2 + $0x260] sm:$0xff]
        %v434 = vld [vmem:[#allocation2 + $0x268] sm:$0xff]
        %v435 = vld [vmem:[#allocation2 + $0x270] sm:$0xff]
        %v436 = vld [vmem:[#allocation2 + $0x278] sm:$0xff]
        %v437 = vld [vmem:[#allocation2 + $0x280] sm:$0xff]
        %v438 = vld [vmem:[#allocation2 + $0x288] sm:$0xff]
        %v439 = vld [vmem:[#allocation2 + $0x290] sm:$0xff]
        %v440 = vld [vmem:[#allocation2 + $0x298] sm:$0xff]
        %v441 = vld [vmem:[#allocation2 + $0x2a0] sm:$0xff]
        %v442 = vld [vmem:[#allocation2 + $0x2a8] sm:$0xff]
        %v443 = vld [vmem:[#allocation2 + $0x2b0] sm:$0xff]
        %v444 = vld [vmem:[#allocation2 + $0x2b8] sm:$0xff]
        %v445 = vld [vmem:[#allocation2 + $0x2c0] sm:$0xff]
        %v446 = vld [vmem:[#allocation2 + $0x2c8] sm:$0xff]
        %v447 = vld [vmem:[#allocation2 + $0x2d0] sm:$0xff]
        %v448 = vld [vmem:[#allocation2 + $0x2d8] sm:$0xff]
        %v449 = vld [vmem:[#allocation2 + $0x2e0] sm:$0xff]
        %v450 = vld [vmem:[#allocation2 + $0x2e8] sm:$0xff]
        %v451 = vld [vmem:[#allocation2 + $0x2f0] sm:$0xff]
        %v452 = vld [vmem:[#allocation2 + $0x2f8] sm:$0xff]
        %v453 = vld [vmem:[#allocation2 + $0x300] sm:$0xff]
        %v454 = vld [vmem:[#allocation2 + $0x308] sm:$0xff]
        %v455 = vld [vmem:[#allocation2 + $0x310] sm:$0xff]
        %v456 = vld [vmem:[#allocation2 + $0x318] sm:$0xff]
        %v457 = vld [vmem:[#allocation2 + $0x320] sm:$0xff]
        %v458 = vld [vmem:[#allocation2 + $0x328] sm:$0xff]
        %v459 = vld [vmem:[#allocation2 + $0x330] sm:$0xff]
        %v460 = vld [vmem:[#allocation2 + $0x338] sm:$0xff]
        %v461 = vld [vmem:[#allocation2 + $0x340] sm:$0xff]
        %v462 = vld [vmem:[#allocation2 + $0x348] sm:$0xff]
        %v463 = vld [vmem:[#allocation2 + $0x350] sm:$0xff]
        %v464 = vld [vmem:[#allocation2 + $0x358] sm:$0xff]
        %v465 = vld [vmem:[#allocation2 + $0x360] sm:$0xff]
        %v466 = vld [vmem:[#allocation2 + $0x368] sm:$0xff]
        %v467 = vld [vmem:[#allocation2 + $0x370] sm:$0xff]
        %v468 = vld [vmem:[#allocation2 + $0x378] sm:$0xff]
        %v469 = vld [vmem:[#allocation2 + $0x380] sm:$0xff]
        %v470 = vld [vmem:[#allocation2 + $0x388] sm:$0xff]
        %v471 = vld [vmem:[%s238] sm:$0xff]
        %v472 = vld [vmem:[%s238 + $0x8] sm:$0xff]
        %v473 = vld [vmem:[%s238 + $0x10] sm:$0xff]
        %v474 = vld [vmem:[%s238 + $0x18] sm:$0xff]
        %v475 = vld [vmem:[%s238 + $0x20] sm:$0xff]
        %v476 = vld [vmem:[%s238 + $0x28] sm:$0xff]
        %v477 = vld [vmem:[%s238 + $0x30] sm:$0xff]
        %v478 = vld [vmem:[%s238 + $0x38] sm:$0xff]
        %v479 = vld [vmem:[%s238 + $0x40] sm:$0xff]
        %v480 = vld [vmem:[%s238 + $0x48] sm:$0xff]
        %v481 = vld [vmem:[%s238 + $0x50] sm:$0xff]
        %v482 = vld [vmem:[%s238 + $0x58] sm:$0xff]
        %v483 = vld [vmem:[%s238 + $0x60] sm:$0xff]
        %v484 = vld [vmem:[%s238 + $0x68] sm:$0xff]
        %v485 = vld [vmem:[%s238 + $0x70] sm:$0xff]
        %v486 = vld [vmem:[%s238 + $0x78] sm:$0xff]
        %v487 = vld [vmem:[%s238 + $0x80] sm:$0xff]
        %v488 = vld [vmem:[%s238 + $0x88] sm:$0xff]
        %v489 = vld [vmem:[%s238 + $0x90] sm:$0xff]
        %v490 = vld [vmem:[%s238 + $0x98] sm:$0xff]
        %v491 = vld [vmem:[%s238 + $0xa0] sm:$0xff]
        %v492 = vld [vmem:[%s238 + $0xa8] sm:$0xff]
        %v493 = vld [vmem:[%s238 + $0xb0] sm:$0xff]
        %v494 = vld [vmem:[%s238 + $0xb8] sm:$0xff]
        %v495 = vld [vmem:[%s238 + $0xc0] sm:$0xff]
        %v496 = vld [vmem:[%s238 + $0xc8] sm:$0xff]
        %v497 = vld [vmem:[%s238 + $0xd0] sm:$0xff]
        %v498 = vld [vmem:[%s238 + $0xd8] sm:$0xff]
        %v499 = vld [vmem:[%s238 + $0xe0] sm:$0xff]
        %v500 = vld [vmem:[%s238 + $0xe8] sm:$0xff]
        %v501 = vld [vmem:[%s238 + $0xf0] sm:$0xff]
        %v502 = vld [vmem:[%s238 + $0xf8] sm:$0xff]
        %v503 = vld [vmem:[%s238 + $0x100] sm:$0xff]
        %v504 = vld [vmem:[%s238 + $0x108] sm:$0xff]
        %v505 = vld [vmem:[%s238 + $0x110] sm:$0xff]
        %v506 = vld [vmem:[%s238 + $0x118] sm:$0xff]
        %v507 = vld [vmem:[%s238 + $0x120] sm:$0xff]
        %v508 = vld [vmem:[%s238 + $0x128] sm:$0xff]
        %v509 = vld [vmem:[%s238 + $0x130] sm:$0xff]
        %v510 = vld [vmem:[%s238 + $0x138] sm:$0xff]
        %v511 = vld [vmem:[%s238 + $0x140] sm:$0xff]
        %v512 = vld [vmem:[%s238 + $0x148] sm:$0xff]
        %v513 = vld [vmem:[%s238 + $0x150] sm:$0xff]
        %v514 = vld [vmem:[%s238 + $0x158] sm:$0xff]
        %v515 = vld [vmem:[%s238 + $0x160] sm:$0xff]
        %v516 = vld [vmem:[%s238 + $0x168] sm:$0xff]
        %v517 = vld [vmem:[%s238 + $0x170] sm:$0xff]
        %v518 = vld [vmem:[%s238 + $0x178] sm:$0xff]
        %519 = vmatprep.subr.mxu0 0.0
        %520 = vmatpush1.msra.mxu0 %v471
        %521 = vmatprep.subr.mxu0 0.0
        %522 = vmatpush1.msra.mxu0 %v472
        %523 = vmatprep.subr.mxu0 0.0
        %524 = vmatpush1.msra.mxu0 %v473
        %525 = vmatprep.subr.mxu0 0.0
        %526 = vmatpush1.msra.mxu0 %v474
        %527 = vmatprep.subr.mxu0 0.0
        %528 = vmatpush1.msra.mxu0 %v475
        %529 = vmatprep.subr.mxu0 0.0
        %530 = vmatpush1.msra.mxu0 %v476
        %531 = vmatprep.subr.mxu0 0.0
        %532 = vmatpush1.msra.mxu0 %v477
        %533 = vmatprep.subr.mxu0 0.0
        %534 = vmatpush1.msra.mxu0 %v478
        %535 = vmatprep.subr.mxu0 0.0
        %536 = vmatpush1.msra.mxu0 %v479
        %537 = vmatprep.subr.mxu0 0.0
        %538 = vmatpush1.msra.mxu0 %v480
        %539 = vmatprep.subr.mxu0 0.0
        %540 = vmatpush1.msra.mxu0 %v481
        %541 = vmatprep.subr.mxu0 0.0
        %542 = vmatpush1.msra.mxu0 %v482
        %543 = vmatprep.subr.mxu0 0.0
        %544 = vmatpush1.msra.mxu0 %v483
        %545 = vmatprep.subr.mxu0 0.0
        %546 = vmatpush1.msra.mxu0 %v484
        %547 = vmatprep.subr.mxu0 0.0
        %548 = vmatpush1.msra.mxu0 %v485
        %549 = vmatprep.subr.mxu0 0.0
        %550 = vmatpush1.msra.mxu0 %v486
        %551 = vmatprep.subr.mxu0 0.0
        %552 = vmatpush1.msra.mxu0 %v487
        %553 = vmatprep.subr.mxu0 0.0
        %554 = vmatpush1.msra.mxu0 %v488
        %555 = vmatprep.subr.mxu0 0.0
        %556 = vmatpush1.msra.mxu0 %v489
        %557 = vmatprep.subr.mxu0 0.0
        %558 = vmatpush1.msra.mxu0 %v490
        %559 = vmatprep.subr.mxu0 0.0
        %560 = vmatpush1.msra.mxu0 %v491
        %561 = vmatprep.subr.mxu0 0.0
        %562 = vmatpush1.msra.mxu0 %v492
        %563 = vmatprep.subr.mxu0 0.0
        %564 = vmatpush1.msra.mxu0 %v493
        %565 = vmatprep.subr.mxu0 0.0
        %566 = vmatpush1.msra.mxu0 %v494
        %567 = vmatprep.subr.mxu0 0.0
        %568 = vmatpush1.msra.mxu0 %v495
        %569 = vmatprep.subr.mxu0 0.0
        %570 = vmatpush1.msra.mxu0 %v496
        %571 = vmatprep.subr.mxu0 0.0
        %572 = vmatpush1.msra.mxu0 %v497
        %573 = vmatprep.subr.mxu0 0.0
        %574 = vmatpush1.msra.mxu0 %v498
        %575 = vmatprep.subr.mxu0 0.0
        %576 = vmatpush1.msra.mxu0 %v499
        %577 = vmatprep.subr.mxu0 0.0
        %578 = vmatpush1.msra.mxu0 %v500
        %579 = vmatprep.subr.mxu0 0.0
        %580 = vmatpush1.msra.mxu0 %v501
        %581 = vmatprep.subr.mxu0 0.0
        %582 = vmatpush1.msra.mxu0 %v502
        %583 = vmatprep.mubr.f32.mxu0 %v358
        %584 = vmatmul.mubr.f32.gmra.mrb[0].mxu0 %v357
        %v585 = vpop.f32.mrb[0].mxu0
        %v586 = vadd.f32 0.0, %v585
        %v587 = vpop.f32.mrb[0].mxu0
        %588 = vmatprep.mubr.f32.mxu0 %v361
        %589 = vmatmul.mubr.f32.gmra.mrb[0].mxu0 %v360
        %v590 = vpop.f32.mrb[0].mxu0
        %v591 = vadd.f32 0.0, %v590
        %v592 = vpop.f32.mrb[0].mxu0
        %593 = vmatprep.mubr.f32.mxu0 %v364
        %594 = vmatmul.mubr.f32.gmra.mrb[0].mxu0 %v363
        %v595 = vpop.f32.mrb[0].mxu0
        %v596 = vadd.f32 0.0, %v595
        %v597 = vpop.f32.mrb[0].mxu0
        %598 = vmatprep.mubr.f32.mxu0 %v367
        %599 = vmatmul.mubr.f32.gmra.mrb[0].mxu0 %v366
        %v600 = vpop.f32.mrb[0].mxu0
        %v601 = vadd.f32 0.0, %v600
        %v602 = vpop.f32.mrb[0].mxu0
        %603 = vmatprep.mubr.f32.mxu0 %v370
        %604 = vmatmul.mubr.f32.gmra.mrb[0].mxu0 %v369
        %v605 = vpop.f32.mrb[0].mxu0
        %v606 = vadd.f32 0.0, %v605
        %v607 = vpop.f32.mrb[0].mxu0
        %608 = vmatprep.mubr.f32.mxu0 %v373
        %609 = vmatmul.mubr.f32.gmra.mrb[0].mxu0 %v372
        %v610 = vpop.f32.mrb[0].mxu0
        %v611 = vadd.f32 0.0, %v610
        %v612 = vpop.f32.mrb[0].mxu0
        %613 = vmatprep.mubr.f32.mxu0 %v376
        %614 = vmatmul.mubr.f32.gmra.mrb[0].mxu0 %v375
        %v615 = vpop.f32.mrb[0].mxu0
        %v616 = vadd.f32 0.0, %v615
        %v617 = vpop.f32.mrb[0].mxu0
        %618 = vmatprep.mubr.f32.mxu0 %v379
        %619 = vmatmul.mubr.f32.gmra.mrb[0].mxu0 %v378
        %v620 = vpop.f32.mrb[0].mxu0
        %v621 = vadd.f32 0.0, %v620
        %v622 = vpop.f32.mrb[0].mxu0
        %623 = vmatprep.mubr.f32.mxu0 %v382
        %624 = vmatmul.mubr.f32.gmra.mrb[0].mxu0 %v381
        %v625 = vpop.f32.mrb[0].mxu0
        %v626 = vadd.f32 0.0, %v625
        %v627 = vpop.f32.mrb[0].mxu0
        %628 = vmatprep.mubr.f32.mxu0 %v385
        %629 = vmatmul.mubr.f32.gmra.mrb[0].mxu0 %v384
        %v630 = vpop.f32.mrb[0].mxu0
        %v631 = vadd.f32 0.0, %v630
        %v632 = vpop.f32.mrb[0].mxu0
        %633 = vmatprep.mubr.f32.mxu0 %v388
        %634 = vmatmul.mubr.f32.gmra.mrb[0].mxu0 %v387
        %v635 = vpop.f32.mrb[0].mxu0
        %v636 = vadd.f32 0.0, %v635
        %v637 = vpop.f32.mrb[0].mxu0
        %638 = vmatprep.mubr.f32.mxu0 %v391
        %639 = vmatmul.mubr.f32.gmra.mrb[0].mxu0 %v390
        %v640 = vpop.f32.mrb[0].mxu0
        %v641 = vadd.f32 0.0, %v640
        %v642 = vpop.f32.mrb[0].mxu0
        %643 = vmatprep.mubr.f32.mxu0 %v394
        %644 = vmatmul.mubr.f32.gmra.mrb[0].mxu0 %v393
        %v645 = vpop.f32.mrb[0].mxu0
        %v646 = vadd.f32 0.0, %v645
        %v647 = vpop.f32.mrb[0].mxu0
        %648 = vmatprep.mubr.f32.mxu0 %v397
        %649 = vmatmul.mubr.f32.gmra.mrb[0].mxu0 %v396
        %v650 = vpop.f32.mrb[0].mxu0
        %v651 = vadd.f32 0.0, %v650
        %v652 = vpop.f32.mrb[0].mxu0
        %653 = vmatprep.mubr.f32.mxu0 %v400
        %654 = vmatmul.mubr.f32.gmra.mrb[0].mxu0 %v399
        %v655 = vpop.f32.mrb[0].mxu0
        %v656 = vadd.f32 0.0, %v655
        %v657 = vpop.f32.mrb[0].mxu0
        %658 = vmatprep.mubr.f32.mxu0 %v403
        %659 = vmatmul.mubr.f32.gmra.mrb[0].mxu0 %v402
        %v660 = vpop.f32.mrb[0].mxu0
        %v661 = vadd.f32 0.0, %v660
        %v662 = vpop.f32.mrb[0].mxu0
        %663 = vmatprep.mubr.f32.mxu0 %v406
        %664 = vmatmul.mubr.f32.gmra.mrb[0].mxu0 %v405
        %v665 = vpop.f32.mrb[0].mxu0
        %v666 = vadd.f32 0.0, %v665
        %v667 = vpop.f32.mrb[0].mxu0
        %668 = vmatprep.mubr.f32.mxu0 %v409
        %669 = vmatmul.mubr.f32.gmra.mrb[0].mxu0 %v408
        %v670 = vpop.f32.mrb[0].mxu0
        %v671 = vadd.f32 0.0, %v670
        %v672 = vpop.f32.mrb[0].mxu0
        %673 = vmatprep.mubr.f32.mxu0 %v412
        %674 = vmatmul.mubr.f32.gmra.mrb[0].mxu0 %v411
        %v675 = vpop.f32.mrb[0].mxu0
        %v676 = vadd.f32 0.0, %v675
        %v677 = vpop.f32.mrb[0].mxu0
        %678 = vmatprep.mubr.f32.mxu0 %v415
        %679 = vmatmul.mubr.f32.gmra.mrb[0].mxu0 %v414
        %v680 = vpop.f32.mrb[0].mxu0
        %v681 = vadd.f32 0.0, %v680
        %v682 = vpop.f32.mrb[0].mxu0
        %683 = vmatprep.mubr.f32.mxu0 %v418
        %684 = vmatmul.mubr.f32.gmra.mrb[0].mxu0 %v417
        %v685 = vpop.f32.mrb[0].mxu0
        %v686 = vadd.f32 0.0, %v685
        %v687 = vpop.f32.mrb[0].mxu0
        %688 = vmatprep.mubr.f32.mxu0 %v421
        %689 = vmatmul.mubr.f32.gmra.mrb[0].mxu0 %v420
        %v690 = vpop.f32.mrb[0].mxu0
        %v691 = vadd.f32 0.0, %v690
        %v692 = vpop.f32.mrb[0].mxu0
        %693 = vmatprep.mubr.f32.mxu0 %v424
        %694 = vmatmul.mubr.f32.gmra.mrb[0].mxu0 %v423
        %v695 = vpop.f32.mrb[0].mxu0
        %v696 = vadd.f32 0.0, %v695
        %v697 = vpop.f32.mrb[0].mxu0
        %698 = vmatprep.mubr.f32.mxu0 %v427
        %699 = vmatmul.mubr.f32.gmra.mrb[0].mxu0 %v426
        %v700 = vpop.f32.mrb[0].mxu0
        %v701 = vadd.f32 0.0, %v700
        %v702 = vpop.f32.mrb[0].mxu0
        %703 = vmatprep.mubr.f32.mxu0 %v430
        %704 = vmatmul.mubr.f32.gmra.mrb[0].mxu0 %v429
        %v705 = vpop.f32.mrb[0].mxu0
        %v706 = vadd.f32 0.0, %v705
        %v707 = vpop.f32.mrb[0].mxu0
        %708 = vmatprep.mubr.f32.mxu0 %v433
        %709 = vmatmul.mubr.f32.gmra.mrb[0].mxu0 %v432
        %v710 = vpop.f32.mrb[0].mxu0
        %v711 = vadd.f32 0.0, %v710
        %v712 = vpop.f32.mrb[0].mxu0
        %713 = vmatprep.mubr.f32.mxu0 %v436
        %714 = vmatmul.mubr.f32.gmra.mrb[0].mxu0 %v435
        %v715 = vpop.f32.mrb[0].mxu0
        %v716 = vadd.f32 0.0, %v715
        %v717 = vpop.f32.mrb[0].mxu0
        %718 = vmatprep.mubr.f32.mxu0 %v439
        %719 = vmatmul.mubr.f32.gmra.mrb[0].mxu0 %v438
        %v720 = vpop.f32.mrb[0].mxu0
        %v721 = vadd.f32 0.0, %v720
        %v722 = vpop.f32.mrb[0].mxu0
        %723 = vmatprep.mubr.f32.mxu0 %v442
        %724 = vmatmul.mubr.f32.gmra.mrb[0].mxu0 %v441
        %v725 = vpop.f32.mrb[0].mxu0
        %v726 = vadd.f32 0.0, %v725
        %v727 = vpop.f32.mrb[0].mxu0
        %728 = vmatprep.mubr.f32.mxu0 %v445
        %729 = vmatmul.mubr.f32.gmra.mrb[0].mxu0 %v444
        %v730 = vpop.f32.mrb[0].mxu0
        %v731 = vadd.f32 0.0, %v730
        %v732 = vpop.f32.mrb[0].mxu0
        %733 = vmatprep.mubr.f32.mxu0 %v448
        %734 = vmatmul.mubr.f32.gmra.mrb[0].mxu0 %v447
        %v735 = vpop.f32.mrb[0].mxu0
        %v736 = vadd.f32 0.0, %v735
        %v737 = vpop.f32.mrb[0].mxu0
        %738 = vmatprep.mubr.f32.mxu0 %v451
        %739 = vmatmul.mubr.f32.gmra.mrb[0].mxu0 %v450
        %v740 = vpop.f32.mrb[0].mxu0
        %v741 = vadd.f32 0.0, %v740
        %v742 = vpop.f32.mrb[0].mxu0
        %743 = vmatprep.mubr.f32.mxu0 %v454
        %744 = vmatmul.mubr.f32.gmra.mrb[0].mxu0 %v453
        %v745 = vpop.f32.mrb[0].mxu0
        %v746 = vadd.f32 0.0, %v745
        %v747 = vpop.f32.mrb[0].mxu0
        %748 = vmatprep.mubr.f32.mxu0 %v457
        %749 = vmatmul.mubr.f32.gmra.mrb[0].mxu0 %v456
        %v750 = vpop.f32.mrb[0].mxu0
        %v751 = vadd.f32 0.0, %v750
        %v752 = vpop.f32.mrb[0].mxu0
        %753 = vmatprep.mubr.f32.mxu0 %v460
        %754 = vmatmul.mubr.f32.gmra.mrb[0].mxu0 %v459
        %v755 = vpop.f32.mrb[0].mxu0
        %v756 = vadd.f32 0.0, %v755
        %v757 = vpop.f32.mrb[0].mxu0
        %758 = vmatprep.mubr.f32.mxu0 %v463
        %759 = vmatmul.mubr.f32.gmra.mrb[0].mxu0 %v462
        %v760 = vpop.f32.mrb[0].mxu0
        %v761 = vadd.f32 0.0, %v760
        %v762 = vpop.f32.mrb[0].mxu0
        %763 = vmatprep.mubr.f32.mxu0 %v466
        %764 = vmatmul.mubr.f32.gmra.mrb[0].mxu0 %v465
        %v765 = vpop.f32.mrb[0].mxu0
        %v766 = vadd.f32 0.0, %v765
        %v767 = vpop.f32.mrb[0].mxu0
        %768 = vmatprep.mubr.f32.mxu0 %v469
        %769 = vmatmul.mubr.f32.gmra.mrb[0].mxu0 %v468
        %v770 = vpop.f32.mrb[0].mxu0
        %v771 = vadd.f32 0.0, %v770
        %v772 = vpop.f32.mrb[0].mxu0
        %773 = vdwg.mxu0
        %774 = vmatprep.subr.mxu0 0.0
        %775 = vmatpush1.msra.mxu0 %v503
        %776 = vmatprep.subr.mxu0 0.0
        %777 = vmatpush1.msra.mxu0 %v504
        %778 = vmatprep.subr.mxu0 0.0
        %779 = vmatpush1.msra.mxu0 %v505
        %780 = vmatprep.subr.mxu0 0.0
        %781 = vmatpush1.msra.mxu0 %v506
        %782 = vmatprep.subr.mxu0 0.0
        %783 = vmatpush1.msra.mxu0 %v507
        %784 = vmatprep.subr.mxu0 0.0
        %785 = vmatpush1.msra.mxu0 %v508
        %786 = vmatprep.subr.mxu0 0.0
        %787 = vmatpush1.msra.mxu0 %v509
        %788 = vmatprep.subr.mxu0 0.0
        %789 = vmatpush1.msra.mxu0 %v510
        %790 = vmatprep.subr.mxu0 0.0
        %791 = vmatpush1.msra.mxu0 %v511
        %792 = vmatprep.subr.mxu0 0.0
        %793 = vmatpush1.msra.mxu0 %v512
        %794 = vmatprep.subr.mxu0 0.0
        %795 = vmatpush1.msra.mxu0 %v513
        %796 = vmatprep.subr.mxu0 0.0
        %797 = vmatpush1.msra.mxu0 %v514
        %798 = vmatprep.subr.mxu0 0.0
        %799 = vmatpush1.msra.mxu0 %v515
        %800 = vmatprep.subr.mxu0 0.0
        %801 = vmatpush1.msra.mxu0 %v516
        %802 = vmatprep.subr.mxu0 0.0
        %803 = vmatpush1.msra.mxu0 %v517
        %804 = vmatprep.subr.mxu0 0.0
        %805 = vmatpush1.msra.mxu0 %v518
        %806 = vmatprep.subr.mxu0 0.0
        %807 = vmatpush1.msra.mxu0 0.0
        %808 = vmatprep.subr.mxu0 0.0
        %809 = vmatpush1.msra.mxu0 0.0
        %810 = vmatprep.subr.mxu0 0.0
        %811 = vmatpush1.msra.mxu0 0.0
        %812 = vmatprep.subr.mxu0 0.0
        %813 = vmatpush1.msra.mxu0 0.0
        %814 = vmatprep.subr.mxu0 0.0
        %815 = vmatpush1.msra.mxu0 0.0
        %816 = vmatprep.subr.mxu0 0.0
        %817 = vmatpush1.msra.mxu0 0.0
        %818 = vmatprep.subr.mxu0 0.0
        %819 = vmatpush1.msra.mxu0 0.0
        %820 = vmatprep.subr.mxu0 0.0
        %821 = vmatpush1.msra.mxu0 0.0
        %822 = vmatprep.subr.mxu0 0.0
        %823 = vmatpush1.msra.mxu0 0.0
        %824 = vmatprep.subr.mxu0 0.0
        %825 = vmatpush1.msra.mxu0 0.0
        %826 = vmatprep.subr.mxu0 0.0
        %827 = vmatpush1.msra.mxu0 0.0
        %828 = vmatprep.subr.mxu0 0.0
        %829 = vmatpush1.msra.mxu0 0.0
        %830 = vmatprep.subr.mxu0 0.0
        %831 = vmatpush1.msra.mxu0 0.0
        %832 = vmatprep.subr.mxu0 0.0
        %833 = vmatpush1.msra.mxu0 0.0
        %834 = vmatprep.subr.mxu0 0.0
        %835 = vmatpush1.msra.mxu0 0.0
        %836 = vmatprep.subr.mxu0 0.0
        %837 = vmatpush1.msra.mxu0 0.0
        %838 = vmatprep.mubr.f32.mxu0 0.0
        %839 = vmatmul.mubr.f32.gmra.mrb[0].mxu0 %v359
        %v840 = vpop.f32.mrb[0].mxu0
        %v841 = vadd.f32 %v586, %v840
        %v842 = vpop.f32.mrb[0].mxu0
        %843 = vmatprep.mubr.f32.mxu0 0.0
        %844 = vmatmul.mubr.f32.gmra.mrb[0].mxu0 %v362
        %v845 = vpop.f32.mrb[0].mxu0
        %v846 = vadd.f32 %v591, %v845
        %v847 = vpop.f32.mrb[0].mxu0
        %848 = vmatprep.mubr.f32.mxu0 0.0
        %849 = vmatmul.mubr.f32.gmra.mrb[0].mxu0 %v365
        %v850 = vpop.f32.mrb[0].mxu0
        %v851 = vadd.f32 %v596, %v850
        %v852 = vpop.f32.mrb[0].mxu0
        %853 = vmatprep.mubr.f32.mxu0 0.0
        %854 = vmatmul.mubr.f32.gmra.mrb[0].mxu0 %v368
        %v855 = vpop.f32.mrb[0].mxu0
        %v856 = vadd.f32 %v601, %v855
        %v857 = vpop.f32.mrb[0].mxu0
        %858 = vmatprep.mubr.f32.mxu0 0.0
        %859 = vmatmul.mubr.f32.gmra.mrb[0].mxu0 %v371
        %v860 = vpop.f32.mrb[0].mxu0
        %v861 = vadd.f32 %v606, %v860
        %v862 = vpop.f32.mrb[0].mxu0
        %863 = vmatprep.mubr.f32.mxu0 0.0
        %864 = vmatmul.mubr.f32.gmra.mrb[0].mxu0 %v374
        %v865 = vpop.f32.mrb[0].mxu0
        %v866 = vadd.f32 %v611, %v865
        %v867 = vpop.f32.mrb[0].mxu0
        %868 = vmatprep.mubr.f32.mxu0 0.0
        %869 = vmatmul.mubr.f32.gmra.mrb[0].mxu0 %v377
        %v870 = vpop.f32.mrb[0].mxu0
        %v871 = vadd.f32 %v616, %v870
        %v872 = vpop.f32.mrb[0].mxu0
        %873 = vmatprep.mubr.f32.mxu0 0.0
        %874 = vmatmul.mubr.f32.gmra.mrb[0].mxu0 %v380
        %v875 = vpop.f32.mrb[0].mxu0
        %v876 = vadd.f32 %v621, %v875
        %v877 = vpop.f32.mrb[0].mxu0
        %878 = vmatprep.mubr.f32.mxu0 0.0
        %879 = vmatmul.mubr.f32.gmra.mrb[0].mxu0 %v383
        %v880 = vpop.f32.mrb[0].mxu0
        %v881 = vadd.f32 %v626, %v880
        %v882 = vpop.f32.mrb[0].mxu0
        %883 = vmatprep.mubr.f32.mxu0 0.0
        %884 = vmatmul.mubr.f32.gmra.mrb[0].mxu0 %v386
        %v885 = vpop.f32.mrb[0].mxu0
        %v886 = vadd.f32 %v631, %v885
        %v887 = vpop.f32.mrb[0].mxu0
        %888 = vmatprep.mubr.f32.mxu0 0.0
        %889 = vmatmul.mubr.f32.gmra.mrb[0].mxu0 %v389
        %v890 = vpop.f32.mrb[0].mxu0
        %v891 = vadd.f32 %v636, %v890
        %v892 = vpop.f32.mrb[0].mxu0
        %893 = vmatprep.mubr.f32.mxu0 0.0
        %894 = vmatmul.mubr.f32.gmra.mrb[0].mxu0 %v392
        %v895 = vpop.f32.mrb[0].mxu0
        %v896 = vadd.f32 %v641, %v895
        %v897 = vpop.f32.mrb[0].mxu0
        %898 = vmatprep.mubr.f32.mxu0 0.0
        %899 = vmatmul.mubr.f32.gmra.mrb[0].mxu0 %v395
        %v900 = vpop.f32.mrb[0].mxu0
        %v901 = vadd.f32 %v646, %v900
        %v902 = vpop.f32.mrb[0].mxu0
        %903 = vmatprep.mubr.f32.mxu0 0.0
        %904 = vmatmul.mubr.f32.gmra.mrb[0].mxu0 %v398
        %v905 = vpop.f32.mrb[0].mxu0
        %v906 = vadd.f32 %v651, %v905
        %v907 = vpop.f32.mrb[0].mxu0
        %908 = vmatprep.mubr.f32.mxu0 0.0
        %909 = vmatmul.mubr.f32.gmra.mrb[0].mxu0 %v401
        %v910 = vpop.f32.mrb[0].mxu0
        %v911 = vadd.f32 %v656, %v910
        %v912 = vpop.f32.mrb[0].mxu0
        %913 = vmatprep.mubr.f32.mxu0 0.0
        %914 = vmatmul.mubr.f32.gmra.mrb[0].mxu0 %v404
        %v915 = vpop.f32.mrb[0].mxu0
        %v916 = vadd.f32 %v661, %v915
        %v917 = vpop.f32.mrb[0].mxu0
        %918 = vmatprep.mubr.f32.mxu0 0.0
        %919 = vmatmul.mubr.f32.gmra.mrb[0].mxu0 %v407
        %v920 = vpop.f32.mrb[0].mxu0
        %v921 = vadd.f32 %v666, %v920
        %v922 = vpop.f32.mrb[0].mxu0
        %923 = vmatprep.mubr.f32.mxu0 0.0
        %924 = vmatmul.mubr.f32.gmra.mrb[0].mxu0 %v410
        %v925 = vpop.f32.mrb[0].mxu0
        %v926 = vadd.f32 %v671, %v925
        %v927 = vpop.f32.mrb[0].mxu0
        %928 = vmatprep.mubr.f32.mxu0 0.0
        %929 = vmatmul.mubr.f32.gmra.mrb[0].mxu0 %v413
        %v930 = vpop.f32.mrb[0].mxu0
        %v931 = vadd.f32 %v676, %v930
        %v932 = vpop.f32.mrb[0].mxu0
        %933 = vmatprep.mubr.f32.mxu0 0.0
        %934 = vmatmul.mubr.f32.gmra.mrb[0].mxu0 %v416
        %v935 = vpop.f32.mrb[0].mxu0
        %v936 = vadd.f32 %v681, %v935
        %v937 = vpop.f32.mrb[0].mxu0
        %938 = vmatprep.mubr.f32.mxu0 0.0
        %939 = vmatmul.mubr.f32.gmra.mrb[0].mxu0 %v419
        %v940 = vpop.f32.mrb[0].mxu0
        %v941 = vadd.f32 %v686, %v940
        %v942 = vpop.f32.mrb[0].mxu0
        %943 = vmatprep.mubr.f32.mxu0 0.0
        %944 = vmatmul.mubr.f32.gmra.mrb[0].mxu0 %v422
        %v945 = vpop.f32.mrb[0].mxu0
        %v946 = vadd.f32 %v691, %v945
        %v947 = vpop.f32.mrb[0].mxu0
        %948 = vmatprep.mubr.f32.mxu0 0.0
        %949 = vmatmul.mubr.f32.gmra.mrb[0].mxu0 %v425
        %v950 = vpop.f32.mrb[0].mxu0
        %v951 = vadd.f32 %v696, %v950
        %v952 = vpop.f32.mrb[0].mxu0
        %953 = vmatprep.mubr.f32.mxu0 0.0
        %954 = vmatmul.mubr.f32.gmra.mrb[0].mxu0 %v428
        %v955 = vpop.f32.mrb[0].mxu0
        %v956 = vadd.f32 %v701, %v955
        %v957 = vpop.f32.mrb[0].mxu0
        %958 = vmatprep.mubr.f32.mxu0 0.0
        %959 = vmatmul.mubr.f32.gmra.mrb[0].mxu0 %v431
        %v960 = vpop.f32.mrb[0].mxu0
        %v961 = vadd.f32 %v706, %v960
        %v962 = vpop.f32.mrb[0].mxu0
        %963 = vmatprep.mubr.f32.mxu0 0.0
        %964 = vmatmul.mubr.f32.gmra.mrb[0].mxu0 %v434
        %v965 = vpop.f32.mrb[0].mxu0
        %v966 = vadd.f32 %v711, %v965
        %v967 = vpop.f32.mrb[0].mxu0
        %968 = vmatprep.mubr.f32.mxu0 0.0
        %969 = vmatmul.mubr.f32.gmra.mrb[0].mxu0 %v437
        %v970 = vpop.f32.mrb[0].mxu0
        %v971 = vadd.f32 %v716, %v970
        %v972 = vpop.f32.mrb[0].mxu0
        %973 = vmatprep.mubr.f32.mxu0 0.0
        %974 = vmatmul.mubr.f32.gmra.mrb[0].mxu0 %v440
        %v975 = vpop.f32.mrb[0].mxu0
        %v976 = vadd.f32 %v721, %v975
        %v977 = vpop.f32.mrb[0].mxu0
        %978 = vmatprep.mubr.f32.mxu0 0.0
        %979 = vmatmul.mubr.f32.gmra.mrb[0].mxu0 %v443
        %v980 = vpop.f32.mrb[0].mxu0
        %v981 = vadd.f32 %v726, %v980
        %v982 = vpop.f32.mrb[0].mxu0
        %983 = vmatprep.mubr.f32.mxu0 0.0
        %984 = vmatmul.mubr.f32.gmra.mrb[0].mxu0 %v446
        %v985 = vpop.f32.mrb[0].mxu0
        %v986 = vadd.f32 %v731, %v985
        %v987 = vpop.f32.mrb[0].mxu0
        %988 = vmatprep.mubr.f32.mxu0 0.0
        %989 = vmatmul.mubr.f32.gmra.mrb[0].mxu0 %v449
        %v990 = vpop.f32.mrb[0].mxu0
        %v991 = vadd.f32 %v736, %v990
        %v992 = vpop.f32.mrb[0].mxu0
        %993 = vmatprep.mubr.f32.mxu0 0.0
        %994 = vmatmul.mubr.f32.gmra.mrb[0].mxu0 %v452
        %v995 = vpop.f32.mrb[0].mxu0
        %v996 = vadd.f32 %v741, %v995
        %v997 = vpop.f32.mrb[0].mxu0
        %998 = vmatprep.mubr.f32.mxu0 0.0
        %999 = vmatmul.mubr.f32.gmra.mrb[0].mxu0 %v455
        %v1000 = vpop.f32.mrb[0].mxu0
        %v1001 = vadd.f32 %v746, %v1000
        %v1002 = vpop.f32.mrb[0].mxu0
        %1003 = vmatprep.mubr.f32.mxu0 0.0
        %1004 = vmatmul.mubr.f32.gmra.mrb[0].mxu0 %v458
        %v1005 = vpop.f32.mrb[0].mxu0
        %v1006 = vadd.f32 %v751, %v1005
        %v1007 = vpop.f32.mrb[0].mxu0
        %1008 = vmatprep.mubr.f32.mxu0 0.0
        %1009 = vmatmul.mubr.f32.gmra.mrb[0].mxu0 %v461
        %v1010 = vpop.f32.mrb[0].mxu0
        %v1011 = vadd.f32 %v756, %v1010
        %v1012 = vpop.f32.mrb[0].mxu0
        %1013 = vmatprep.mubr.f32.mxu0 0.0
        %1014 = vmatmul.mubr.f32.gmra.mrb[0].mxu0 %v464
        %v1015 = vpop.f32.mrb[0].mxu0
        %v1016 = vadd.f32 %v761, %v1015
        %v1017 = vpop.f32.mrb[0].mxu0
        %1018 = vmatprep.mubr.f32.mxu0 0.0
        %1019 = vmatmul.mubr.f32.gmra.mrb[0].mxu0 %v467
        %v1020 = vpop.f32.mrb[0].mxu0
        %v1021 = vadd.f32 %v766, %v1020
        %v1022 = vpop.f32.mrb[0].mxu0
        %1023 = vmatprep.mubr.f32.mxu0 0.0
        %1024 = vmatmul.mubr.f32.gmra.mrb[0].mxu0 %v470
        %v1025 = vpop.f32.mrb[0].mxu0
        %v1026 = vadd.f32 %v771, %v1025
        %v1027 = vpop.f32.mrb[0].mxu0
        %1028 = vdwg.mxu0
        %v1029 = vadd.f32 %v319, %v841
        %v1030 = vadd.f32 %v320, %v846
        %v1031 = vadd.f32 %v321, %v851
        %v1032 = vadd.f32 %v322, %v856
        %v1033 = vadd.f32 %v323, %v861
        %v1034 = vadd.f32 %v324, %v866
        %v1035 = vadd.f32 %v325, %v871
        %v1036 = vadd.f32 %v326, %v876
        %v1037 = vadd.f32 %v327, %v881
        %v1038 = vadd.f32 %v328, %v886
        %v1039 = vadd.f32 %v329, %v891
        %v1040 = vadd.f32 %v330, %v896
        %v1041 = vadd.f32 %v331, %v901
        %v1042 = vadd.f32 %v332, %v906
        %v1043 = vadd.f32 %v333, %v911
        %v1044 = vadd.f32 %v334, %v916
        %v1045 = vadd.f32 %v335, %v921
        %v1046 = vadd.f32 %v336, %v926
        %v1047 = vadd.f32 %v337, %v931
        %v1048 = vadd.f32 %v338, %v936
        %v1049 = vadd.f32 %v339, %v941
        %v1050 = vadd.f32 %v340, %v946
        %v1051 = vadd.f32 %v341, %v951
        %v1052 = vadd.f32 %v342, %v956
        %v1053 = vadd.f32 %v343, %v961
        %v1054 = vadd.f32 %v344, %v966
        %v1055 = vadd.f32 %v345, %v971
        %v1056 = vadd.f32 %v346, %v976
        %v1057 = vadd.f32 %v347, %v981
        %v1058 = vadd.f32 %v348, %v986
        %v1059 = vadd.f32 %v349, %v991
        %v1060 = vadd.f32 %v350, %v996
        %v1061 = vadd.f32 %v351, %v1001
        %v1062 = vadd.f32 %v352, %v1006
        %v1063 = vadd.f32 %v353, %v1011
        %v1064 = vadd.f32 %v354, %v1016
        %v1065 = vadd.f32 %v355, %v1021
        %v1066 = vadd.f32 %v356, %v1026
        %1067 = vst [vmem:[%s272] sm:$0xff] %v1029
        %1068 = vst [vmem:[%s272 + $0x8] sm:$0xff] %v1030
        %1069 = vst [vmem:[%s272 + $0x10] sm:$0xff] %v1031
        %1070 = vst [vmem:[%s272 + $0x18] sm:$0xff] %v1032
        %1071 = vst [vmem:[%s272 + $0x20] sm:$0xff] %v1033
        %1072 = vst [vmem:[%s272 + $0x28] sm:$0xff] %v1034
        %1073 = vst [vmem:[%s272 + $0x30] sm:$0xff] %v1035
        %1074 = vst [vmem:[%s272 + $0x38] sm:$0xff] %v1036
        %1075 = vst [vmem:[%s272 + $0x40] sm:$0xff] %v1037
        %1076 = vst [vmem:[%s272 + $0x48] sm:$0xff] %v1038
        %1077 = vst [vmem:[%s272 + $0x50] sm:$0xff] %v1039
        %1078 = vst [vmem:[%s272 + $0x58] sm:$0xff] %v1040
        %1079 = vst [vmem:[%s272 + $0x60] sm:$0xff] %v1041
        %1080 = vst [vmem:[%s272 + $0x68] sm:$0xff] %v1042
        %1081 = vst [vmem:[%s272 + $0x70] sm:$0xff] %v1043
        %1082 = vst [vmem:[%s272 + $0x78] sm:$0xff] %v1044
        %1083 = vst [vmem:[%s272 + $0x80] sm:$0xff] %v1045
        %1084 = vst [vmem:[%s272 + $0x88] sm:$0xff] %v1046
        %1085 = vst [vmem:[%s272 + $0x90] sm:$0xff] %v1047
        %1086 = vst [vmem:[%s272 + $0x98] sm:$0xff] %v1048
        %1087 = vst [vmem:[%s272 + $0xa0] sm:$0xff] %v1049
        %1088 = vst [vmem:[%s272 + $0xa8] sm:$0xff] %v1050
        %1089 = vst [vmem:[%s272 + $0xb0] sm:$0xff] %v1051
        %1090 = vst [vmem:[%s272 + $0xb8] sm:$0xff] %v1052
        %1091 = vst [vmem:[%s272 + $0xc0] sm:$0xff] %v1053
        %1092 = vst [vmem:[%s272 + $0xc8] sm:$0xff] %v1054
        %1093 = vst [vmem:[%s272 + $0xd0] sm:$0xff] %v1055
        %1094 = vst [vmem:[%s272 + $0xd8] sm:$0xff] %v1056
        %1095 = vst [vmem:[%s272 + $0xe0] sm:$0xff] %v1057
        %1096 = vst [vmem:[%s272 + $0xe8] sm:$0xff] %v1058
        %1097 = vst [vmem:[%s272 + $0xf0] sm:$0xff] %v1059
        %1098 = vst [vmem:[%s272 + $0xf8] sm:$0xff] %v1060
        %1099 = vst [vmem:[%s272 + $0x100] sm:$0xff] %v1061
        %1100 = vst [vmem:[%s272 + $0x108] sm:$0xff] %v1062
        %1101 = vst [vmem:[%s272 + $0x110] sm:$0xff] %v1063
        %1102 = vst [vmem:[%s272 + $0x118] sm:$0xff] %v1064
        %1103 = vst [vmem:[%s272 + $0x120] sm:$0xff] %v1065
        %1104 = vst [vmem:[%s272 + $0x128] sm:$0xff] %v1066
        // Predicated region
        $region49: #{tpu_custom_call.1} parent=31 // pred_check
          %p1105 = pneg %p277
        $region50: #{tpu_custom_call.1} parent=31 // pred_check_branch
          %1107 = sbr.rel (%p1105) target = $region52
        $region51: #{tpu_custom_call.1} parent=31 // pred_region
          %v1108 = vld [vmem:[%s272] sm:$0xff]
          %v1109 = vld [vmem:[%s272 + $0x8] sm:$0xff]
          %v1110 = vld [vmem:[%s272 + $0x10] sm:$0xff]
          %v1111 = vld [vmem:[%s272 + $0x18] sm:$0xff]
          %v1112 = vld [vmem:[%s272 + $0x20] sm:$0xff]
          %v1113 = vld [vmem:[%s272 + $0x28] sm:$0xff]
          %v1114 = vld [vmem:[%s272 + $0x30] sm:$0xff]
          %v1115 = vld [vmem:[%s272 + $0x38] sm:$0xff]
          %v1116 = vld [vmem:[%s272 + $0x40] sm:$0xff]
          %v1117 = vld [vmem:[%s272 + $0x48] sm:$0xff]
          %v1118 = vld [vmem:[%s272 + $0x50] sm:$0xff]
          %v1119 = vld [vmem:[%s272 + $0x58] sm:$0xff]
          %v1120 = vld [vmem:[%s272 + $0x60] sm:$0xff]
          %v1121 = vld [vmem:[%s272 + $0x68] sm:$0xff]
          %v1122 = vld [vmem:[%s272 + $0x70] sm:$0xff]
          %v1123 = vld [vmem:[%s272 + $0x78] sm:$0xff]
          %v1124 = vld [vmem:[%s272 + $0x80] sm:$0xff]
          %v1125 = vld [vmem:[%s272 + $0x88] sm:$0xff]
          %v1126 = vld [vmem:[%s272 + $0x90] sm:$0xff]
          %v1127 = vld [vmem:[%s272 + $0x98] sm:$0xff]
          %v1128 = vld [vmem:[%s272 + $0xa0] sm:$0xff]
          %v1129 = vld [vmem:[%s272 + $0xa8] sm:$0xff]
          %v1130 = vld [vmem:[%s272 + $0xb0] sm:$0xff]
          %v1131 = vld [vmem:[%s272 + $0xb8] sm:$0xff]
          %v1132 = vld [vmem:[%s272 + $0xc0] sm:$0xff]
          %v1133 = vld [vmem:[%s272 + $0xc8] sm:$0xff]
          %v1134 = vld [vmem:[%s272 + $0xd0] sm:$0xff]
          %v1135 = vld [vmem:[%s272 + $0xd8] sm:$0xff]
          %v1136 = vld [vmem:[%s272 + $0xe0] sm:$0xff]
          %v1137 = vld [vmem:[%s272 + $0xe8] sm:$0xff]
          %v1138 = vld [vmem:[%s272 + $0xf0] sm:$0xff]
          %v1139 = vld [vmem:[%s272 + $0xf8] sm:$0xff]
          %v1140 = vld [vmem:[%s272 + $0x100] sm:$0xff]
          %v1141 = vld [vmem:[%s272 + $0x108] sm:$0xff]
          %v1142 = vld [vmem:[%s272 + $0x110] sm:$0xff]
          %v1143 = vld [vmem:[%s272 + $0x118] sm:$0xff]
          %v1144 = vld [vmem:[%s272 + $0x120] sm:$0xff]
          %v1145 = vld [vmem:[%s272 + $0x128] sm:$0xff]
          %v1146 = vld [vmem:[%s246] sm:$0x1]
          %v1148 = vlaneseq
          %v1149 = vshrl.u32 %v1148, 7
          %v1150 = vsub.s32 0, %v1149
          %v1151 = vrot.slane %v1146, %v1150
          %v1153 = vadd.f32 %v1108, %v1151
          %v1154 = vadd.f32 %v1109, %v1151
          %v1155 = vadd.f32 %v1110, %v1151
          %v1156 = vadd.f32 %v1111, %v1151
          %v1157 = vadd.f32 %v1112, %v1151
          %v1158 = vadd.f32 %v1113, %v1151
          %v1159 = vadd.f32 %v1114, %v1151
          %v1160 = vadd.f32 %v1115, %v1151
          %v1161 = vadd.f32 %v1116, %v1151
          %v1162 = vadd.f32 %v1117, %v1151
          %v1163 = vadd.f32 %v1118, %v1151
          %v1164 = vadd.f32 %v1119, %v1151
          %v1165 = vadd.f32 %v1120, %v1151
          %v1166 = vadd.f32 %v1121, %v1151
          %v1167 = vadd.f32 %v1122, %v1151
          %v1168 = vadd.f32 %v1123, %v1151
          %v1169 = vadd.f32 %v1124, %v1151
          %v1170 = vadd.f32 %v1125, %v1151
          %v1171 = vadd.f32 %v1126, %v1151
          %v1172 = vadd.f32 %v1127, %v1151
          %v1173 = vadd.f32 %v1128, %v1151
          %v1174 = vadd.f32 %v1129, %v1151
          %v1175 = vadd.f32 %v1130, %v1151
          %v1176 = vadd.f32 %v1131, %v1151
          %v1177 = vadd.f32 %v1132, %v1151
          %v1178 = vadd.f32 %v1133, %v1151
          %v1179 = vadd.f32 %v1134, %v1151
          %v1180 = vadd.f32 %v1135, %v1151
          %v1181 = vadd.f32 %v1136, %v1151
          %v1182 = vadd.f32 %v1137, %v1151
          %v1183 = vadd.f32 %v1138, %v1151
          %v1184 = vadd.f32 %v1139, %v1151
          %v1185 = vadd.f32 %v1140, %v1151
          %v1186 = vadd.f32 %v1141, %v1151
          %v1187 = vadd.f32 %v1142, %v1151
          %v1188 = vadd.f32 %v1143, %v1151
          %v1189 = vadd.f32 %v1144, %v1151
          %v1190 = vadd.f32 %v1145, %v1151
          %1191 = vst [vmem:[%s272] sm:$0xff] %v1153
          %1192 = vst [vmem:[%s272 + $0x8] sm:$0xff] %v1154
          %1193 = vst [vmem:[%s272 + $0x10] sm:$0xff] %v1155
          %1194 = vst [vmem:[%s272 + $0x18] sm:$0xff] %v1156
          %1195 = vst [vmem:[%s272 + $0x20] sm:$0xff] %v1157
          %1196 = vst [vmem:[%s272 + $0x28] sm:$0xff] %v1158
          %1197 = vst [vmem:[%s272 + $0x30] sm:$0xff] %v1159
          %1198 = vst [vmem:[%s272 + $0x38] sm:$0xff] %v1160
          %1199 = vst [vmem:[%s272 + $0x40] sm:$0xff] %v1161
          %1200 = vst [vmem:[%s272 + $0x48] sm:$0xff] %v1162
          %1201 = vst [vmem:[%s272 + $0x50] sm:$0xff] %v1163
          %1202 = vst [vmem:[%s272 + $0x58] sm:$0xff] %v1164
          %1203 = vst [vmem:[%s272 + $0x60] sm:$0xff] %v1165
          %1204 = vst [vmem:[%s272 + $0x68] sm:$0xff] %v1166
          %1205 = vst [vmem:[%s272 + $0x70] sm:$0xff] %v1167
          %1206 = vst [vmem:[%s272 + $0x78] sm:$0xff] %v1168
          %1207 = vst [vmem:[%s272 + $0x80] sm:$0xff] %v1169
          %1208 = vst [vmem:[%s272 + $0x88] sm:$0xff] %v1170
          %1209 = vst [vmem:[%s272 + $0x90] sm:$0xff] %v1171
          %1210 = vst [vmem:[%s272 + $0x98] sm:$0xff] %v1172
          %1211 = vst [vmem:[%s272 + $0xa0] sm:$0xff] %v1173
          %1212 = vst [vmem:[%s272 + $0xa8] sm:$0xff] %v1174
          %1213 = vst [vmem:[%s272 + $0xb0] sm:$0xff] %v1175
          %1214 = vst [vmem:[%s272 + $0xb8] sm:$0xff] %v1176
          %1215 = vst [vmem:[%s272 + $0xc0] sm:$0xff] %v1177
          %1216 = vst [vmem:[%s272 + $0xc8] sm:$0xff] %v1178
          %1217 = vst [vmem:[%s272 + $0xd0] sm:$0xff] %v1179
          %1218 = vst [vmem:[%s272 + $0xd8] sm:$0xff] %v1180
          %1219 = vst [vmem:[%s272 + $0xe0] sm:$0xff] %v1181
          %1220 = vst [vmem:[%s272 + $0xe8] sm:$0xff] %v1182
          %1221 = vst [vmem:[%s272 + $0xf0] sm:$0xff] %v1183
          %1222 = vst [vmem:[%s272 + $0xf8] sm:$0xff] %v1184
          %1223 = vst [vmem:[%s272 + $0x100] sm:$0xff] %v1185
          %1224 = vst [vmem:[%s272 + $0x108] sm:$0xff] %v1186
          %1225 = vst [vmem:[%s272 + $0x110] sm:$0xff] %v1187
          %1226 = vst [vmem:[%s272 + $0x118] sm:$0xff] %v1188
          %1227 = vst [vmem:[%s272 + $0x120] sm:$0xff] %v1189
          %1228 = vst [vmem:[%s272 + $0x128] sm:$0xff] %v1190
        $region52: #{tpu_custom_call.1} parent=31 // pred_fallthru
          _
        %s1229 = sand.u32 %s132, 1
        %s1230 = scalar_lea.sflag [#allocation4], %s1229
        %s1231 = sand.u32 %s132, 1
        %s1232 = smul.addr %s1231, 304
        %s1233 = scalar_lea.vmem [#allocation8], %s1232
        // Predicated region
        $region53: #{tpu_custom_call.1} parent=31 // pred_check
          %p1234 = pneg %p142
        $region54: #{tpu_custom_call.1} parent=31 // pred_check_branch
          %1236 = sbr.rel (%p1234) target = $region56
        $region55: #{tpu_custom_call.1} parent=31 // pred_region
          %s1237 = smul.u32 38, %s26
          %s1239 = ssub.s32 4864, 4864
          %1240 = vsyncadd %s1230, %s1239
          %s1241 = smul.addr %s1237, 2
          %s1242 = sadd.s32 %s27, %s1241
          %s1243 = smul.addr %s1242, 128
          %s1244 = scalar_lea.hbm %s3, %s1243
          %s1245 = sshll.u32 %s1233, 4
          %s1246 = int_to_ptr.vmem [resolvable:$true] %s1245
          %1251 = dma.vmem_to_hbm [thread:$0]  %s1246, 4864, %s1244, %s1230, 128, 256, 8
        $region56: #{tpu_custom_call.1} parent=31 // pred_fallthru
          _
      $region32: #{tpu_custom_call.1} parent=5 // pred_fallthru
        _
      %p1252 = scmp.le.s32.totalorder 2, %s16
      // Predicated region
      $region57: #{tpu_custom_call.1} parent=5 // pred_check
        %p1253 = pneg %p1252
      $region58: #{tpu_custom_call.1} parent=5 // pred_check_branch
        %1255 = sbr.rel (%p1253) target = $region60
      $region59: #{tpu_custom_call.1} parent=5 // pred_region
        %s1256 = ssub.s32 %s16, 2
        // Predicated region
        $region61: #{tpu_custom_call.1} parent=59 // pred_check
          %p1257 = pneg %p148
        $region62: #{tpu_custom_call.1} parent=59 // pred_check_branch
          %1259 = sbr.rel (%p1257) target = $region64
        $region63: #{tpu_custom_call.1} parent=59 // pred_region
          %s1260 = sand.u32 %s133, 1
          %s1261 = scalar_lea.sflag [#allocation4], %s1260
          %s1262 = sand.u32 %s133, 1
          %s1263 = smul.addr %s1262, 304
          %s1264 = scalar_lea.vmem [#allocation8], %s1263
          %1265 = dma.done %s1261, 4864
        $region64: #{tpu_custom_call.1} parent=59 // pred_fallthru
          _
      $region60: #{tpu_custom_call.1} parent=5 // pred_fallthru
        _
    $region6: #{tpu_custom_call.1} parent=1 // loop_footer
      %s20 = sadd.s32 1, %s16
    $region7: #{tpu_custom_call.1} parent=1 // loop_footer_branch
      %15 = sbr.rel target = $region3
    $region8: #{tpu_custom_call.1} parent=1 // loop_exit
      _
    %1266 = vsyncpa [#allocation3], 1
    %s1267 = scalar_lea.sflag [#allocation3], 1
    %1268 = vsyncpa %s1267, 1
    %1269 = vsyncpa [#allocation6], 1
    %s1270 = scalar_lea.sflag [#allocation6], 1
    %1271 = vsyncpa %s1270, 1
    %1272 = vsyncpa [#allocation4], 1
    %s1273 = scalar_lea.sflag [#allocation4], 1
    %1274 = vsyncpa %s1273, 1

</llo_original>
